<compile_context>
chip_gen: v5e
topology: v5e:2x2
jax: 0.10.0
libtpu: 0.0.40
codegen_flags: <defaults>
</compile_context>

<pallas_src>
import functools
import math

import jax
import jax.numpy as jnp
from jax.experimental import pallas as pl
from jax.experimental.pallas import tpu as pltpu


def _round_up(a, b):
    return (a + b - 1) // b * b


def _default_tiles():
    """Generation-aware (tile_m, tile_k) defaults for the adjacency stream."""
    try:
        kind = jax.devices()[0].device_kind.lower()
    except Exception:  # pragma: no cover - defensive
        kind = ""
    if any(tag in kind for tag in ("v6", "v7", "tpu7")):
        # 1024x4096 bf16 adj tile = 8 MiB, double-buffered 16 MiB; total ~22 MiB
        # with the x / residual / output streams -> fits the 32 MiB default scope.
        return 1024, 4096
    # v5e (16 MiB default scoped VMEM) and conservative fallback: ~7.5 MiB total.
    return 512, 2048


def _diffuse_kernel(adj_ref, xk_ref, xi_ref, deg_ref, w1_ref, b1_ref, w2_ref,
                    b2_ref, gamma_ref, beta_ref, out_ref, *, f_true, alpha,
                    mlp_dtype):
    k = pl.program_id(1)

    # ---- DiffuseMP mean aggregation numerator: accumulate A_tile @ x_tile ----
    # adj is streamed as bf16 (exact edge counts) and up-cast in-register, so the
    # accumulation is exact f32.  out_ref (f32, block index constant over k) is
    # the accumulator -> no VMEM scratch, no epilogue copy.
    partial = jnp.dot(adj_ref[...].astype(jnp.float32), xk_ref[...],
                      preferred_element_type=jnp.float32)

    @pl.when(k == 0)
    def _init():
        out_ref[...] = partial

    @pl.when(k > 0)
    def _accum():
        out_ref[...] += partial

    @pl.when(k == pl.num_programs(1) - 1)
    def _epilogue():
        x = xi_ref[...]                                      # [TM, Fp] f32

        # mean over incoming edges; isolated nodes -> 0 (PyG 'mean' behavior).
        # Exact f32 divide (no approx reciprocal) on the default path.
        local_mean = out_ref[...] / jnp.maximum(deg_ref[...], 1.0)

        # feature_diff = tanh(||x - local_mean||_2); padded lanes are exactly 0.
        diff = x - local_mean
        fd = jnp.tanh(jnp.sqrt(jnp.sum(diff * diff, axis=-1, keepdims=True)))

        # feature_net: Linear -> ReLU -> Linear (weights resident across the grid).
        # Optionally run the two small matmuls with bf16 operands (f32 accum).
        xm = x.astype(mlp_dtype)
        h = jnp.dot(xm, w1_ref[...].astype(mlp_dtype),
                    preferred_element_type=jnp.float32) + b1_ref[...]
        h = jnp.maximum(h, 0.0)
        enhanced = jnp.dot(h.astype(mlp_dtype), w2_ref[...].astype(mlp_dtype),
                           preferred_element_type=jnp.float32) + b2_ref[...]

        y = x + alpha * enhanced * fd                        # padded lanes stay 0

        # Two-pass, lane-masked LayerNorm over the true feature width (robust:
        # no E[y^2] - mu^2 cancellation; padded lanes excluded explicitly).
        inv_f = 1.0 / float(f_true)
        lane = jax.lax.broadcasted_iota(jnp.int32, y.shape, dimension=1)
        valid = lane < f_true
        mu = jnp.sum(y, axis=-1, keepdims=True) * inv_f      # padded lanes are 0
        yc = jnp.where(valid, y - mu, 0.0)
        var = jnp.sum(yc * yc, axis=-1, keepdims=True) * inv_f
        y_norm = yc * jax.lax.rsqrt(var + 1e-5)
        # gamma/beta are zero on padded lanes -> padded output columns remain 0.
        out_ref[...] = y_norm * gamma_ref[...] + beta_ref[...]


def diffuse_enhancer(x, edge_index, params, *, tile_m=None, tile_k=None,
                     adj_dtype=jnp.bfloat16, mlp_dtype=jnp.float32):
    """x: [N, F] float32; edge_index: [2, E] int32 (row 0 = src, row 1 = dst)."""
    n, f = x.shape
    w1, b1, w2, b2, gamma, beta = params
    hid = w1.shape[1]

    # ---- lane-dense padding of feature / hidden dims ----
    fp = max(_round_up(f, 128), 128)
    hp = max(_round_up(hid, 128), 128)

    # ---- tile selection: row (M) and column (K) axes padded independently ----
    dm, dk = _default_tiles()
    tile_m = max(128, _round_up(tile_m if tile_m is not None else dm, 128))
    tile_k = max(128, _round_up(tile_k if tile_k is not None else dk, 128))

    np0 = max(_round_up(n, 128), 128)
    nm = math.ceil(np0 / tile_m)
    tm = _round_up(math.ceil(np0 / nm), 128)
    n_row = nm * tm                                  # destination-node axis (M)
    nk = math.ceil(np0 / tile_k)
    tk = _round_up(math.ceil(np0 / nk), 128)
    n_col = nk * tk                                  # source-node axis (K)

    x_res = jnp.zeros((n_row, fp), jnp.float32).at[:n, :f].set(x)
    x_agg = jnp.zeros((n_col, fp), jnp.float32).at[:n, :f].set(x)

    src, dst = edge_index[0], edge_index[1]
    # Dense adjacency with edge multiplicities: A[i, j] = #edges j -> i
    # (source_to_target flow), counted in numerator AND denominator like PyG mean.
    # Built directly in adj_dtype (bf16 default: counts are exact, HBM bytes halved).
    adj = jnp.zeros((n_row, n_col), adj_dtype).at[dst, src].add(1.0)
    deg = jnp.zeros((n_row,), jnp.float32).at[dst].add(1.0).reshape(n_row, 1)

    w1p = jnp.zeros((fp, hp), jnp.float32).at[:f, :hid].set(w1)
    b1p = jnp.zeros((1, hp), jnp.float32).at[0, :hid].set(b1)
    w2p = jnp.zeros((hp, fp), jnp.float32).at[:hid, :f].set(w2)
    b2p = jnp.zeros((1, fp), jnp.float32).at[0, :f].set(b2)
    gp = jnp.zeros((1, fp), jnp.float32).at[0, :f].set(gamma)
    bp = jnp.zeros((1, fp), jnp.float32).at[0, :f].set(beta)

    grid = (n_row // tm, n_col // tk)
    kernel = functools.partial(_diffuse_kernel, f_true=int(f), alpha=0.2,
                               mlp_dtype=mlp_dtype)

    out_p = pl.pallas_call(
        kernel,
        out_shape=jax.ShapeDtypeStruct((n_row, fp), jnp.float32),
        grid_spec=pltpu.PrefetchScalarGridSpec(
            num_scalar_prefetch=0,
            grid=grid,
            in_specs=[
                pl.BlockSpec((tm, tk), lambda i, k: (i, k)),   # adj tile (bf16)
                pl.BlockSpec((tk, fp), lambda i, k: (k, 0)),   # x rows (reduction)
                pl.BlockSpec((tm, fp), lambda i, k: (i, 0)),   # x rows (residual)
                pl.BlockSpec((tm, 1), lambda i, k: (i, 0)),    # in-degree
                pl.BlockSpec((fp, hp), lambda i, k: (0, 0)),   # w1 (resident)
                pl.BlockSpec((1, hp), lambda i, k: (0, 0)),    # b1
                pl.BlockSpec((hp, fp), lambda i, k: (0, 0)),   # w2
                pl.BlockSpec((1, fp), lambda i, k: (0, 0)),    # b2
                pl.BlockSpec((1, fp), lambda i, k: (0, 0)),    # gamma
                pl.BlockSpec((1, fp), lambda i, k: (0, 0)),    # beta
            ],
            out_specs=pl.BlockSpec((tm, fp), lambda i, k: (i, 0)),
        ),
        compiler_params=pltpu.CompilerParams(
            dimension_semantics=("parallel", "arbitrary")),
    )(adj, x_agg, x_res, deg, w1p, b1p, w2p, b2p, gp, bp)

    return out_p[:n, :f]


def make_params(key, hit_features):
    """Deterministic synthetic parameters (shapes match the PyTorch module)."""
    hf, hf2 = hit_features, hit_features // 2
    k1, k2, k3, k4 = jax.random.split(key, 4)
    # Linear(hf, hf//2) then Linear(hf//2, hf); stored as [in, out] for x @ W
    w1 = jax.random.normal(k1, (hf, hf2), jnp.float32) * (1.0 / jnp.sqrt(hf))
    b1 = jax.random.normal(k2, (hf2,), jnp.float32) * 0.01
    w2 = jax.random.normal(k3, (hf2, hf), jnp.float32) * (1.0 / jnp.sqrt(hf2))
    b2 = jax.random.normal(k4, (hf,), jnp.float32) * 0.01
    gamma = jnp.ones((hf,), jnp.float32)   # LayerNorm weight
    beta = jnp.zeros((hf,), jnp.float32)   # LayerNorm bias
    return (w1, b1, w2, b2, gamma, beta)


def _reference(x, edge_index, params):
    """Pure-JAX reference for correctness check."""
    n, f = x.shape
    src, dst = edge_index[0], edge_index[1]
    agg = jnp.zeros_like(x).at[dst].add(x[src])
    cnt = jnp.zeros((n,), jnp.float32).at[dst].add(1.0)
    local_mean = agg / jnp.maximum(cnt, 1.0)[:, None]
    fd = jnp.tanh(jnp.linalg.norm(x - local_mean, axis=1, keepdims=True))
    w1, b1, w2, b2, gamma, beta = params
    enhanced = jnp.maximum(x @ w1 + b1, 0.0) @ w2 + b2
    y = x + 0.2 * enhanced * fd
    mu = jnp.mean(y, axis=-1, keepdims=True)
    var = jnp.mean((y - mu) ** 2, axis=-1, keepdims=True)
    return (y - mu) / jnp.sqrt(var + 1e-5) * gamma + beta


if __name__ == "__main__":
    hit_features = 32
    num_nodes = 16
    num_edges = 48

    key = jax.random.PRNGKey(0)
    kx, ke_src, ke_dst, kp = jax.random.split(key, 4)

    x = jax.random.normal(kx, (num_nodes, hit_features), jnp.float32)
    edge_index = jnp.stack([
        jax.random.randint(ke_src, (num_edges,), 0, num_nodes, jnp.int32),
        jax.random.randint(ke_dst, (num_edges,), 0, num_nodes, jnp.int32),
    ], axis=0)

    params = make_params(kp, hit_features)
    ref = _reference(x, edge_index, params)

    # Default path: bf16 adjacency stream (exact counts), f32 accumulation, f32 MLP.
    out = diffuse_enhancer(x, edge_index, params)
    jax.block_until_ready(out)
    assert out.shape == (num_nodes, hit_features)
    assert jnp.allclose(out, ref, atol=1e-4, rtol=1e-4), "default kernel mismatch vs reference"

    # Optional v6e/v7x epilogue optimization: bf16 feature_net operands (f32 accum).
    out_bf16 = diffuse_enhancer(x, edge_index, params, mlp_dtype=jnp.bfloat16)
    jax.block_until_ready(out_bf16)
    assert jnp.allclose(out_bf16, ref, atol=5e-2, rtol=5e-2), "bf16-mlp kernel mismatch vs reference"

    print("KERNEL_OK")
</pallas_src>

<mosaic_0001>
module attributes {stable_mosaic.version = 11 : i64} {
  func.func @_diffuse_kernel(%arg0: i32, %arg1: i32, %arg2: memref<128x128xbf16, #tpu.memory_space<vmem>>, %arg3: memref<128x128xf32, #tpu.memory_space<vmem>>, %arg4: memref<128x128xf32, #tpu.memory_space<vmem>>, %arg5: memref<128x1xf32, #tpu.memory_space<vmem>>, %arg6: memref<128x128xf32, #tpu.memory_space<vmem>>, %arg7: memref<1x128xf32, #tpu.memory_space<vmem>>, %arg8: memref<128x128xf32, #tpu.memory_space<vmem>>, %arg9: memref<1x128xf32, #tpu.memory_space<vmem>>, %arg10: memref<1x128xf32, #tpu.memory_space<vmem>>, %arg11: memref<1x128xf32, #tpu.memory_space<vmem>>, %arg12: memref<128x128xf32, #tpu.memory_space<vmem>>) attributes {dimension_semantics = [#tpu.dimension_semantics<parallel>, #tpu.dimension_semantics<arbitrary>], iteration_bounds = array<i64: 1, 1>, scalar_prefetch = 0 : i64, scratch_operands = 0 : i64, tpu.core_type = #tpu.core_type<tc>, window_params = [{transform_indices = @transform_0, window_bounds = array<i64: 128, 128>}, {transform_indices = @transform_1, window_bounds = array<i64: 128, 128>}, {transform_indices = @transform_2, window_bounds = array<i64: 128, 128>}, {transform_indices = @transform_3, window_bounds = array<i64: 128, 1>}, {pipeline_mode = #tpu.pipeline_mode<synchronous>, transform_indices = @transform_4, window_bounds = array<i64: 128, 128>}, {pipeline_mode = #tpu.pipeline_mode<synchronous>, transform_indices = @transform_5, window_bounds = array<i64: 1, 128>}, {pipeline_mode = #tpu.pipeline_mode<synchronous>, transform_indices = @transform_6, window_bounds = array<i64: 128, 128>}, {pipeline_mode = #tpu.pipeline_mode<synchronous>, transform_indices = @transform_7, window_bounds = array<i64: 1, 128>}, {pipeline_mode = #tpu.pipeline_mode<synchronous>, transform_indices = @transform_8, window_bounds = array<i64: 1, 128>}, {pipeline_mode = #tpu.pipeline_mode<synchronous>, transform_indices = @transform_9, window_bounds = array<i64: 1, 128>}, {transform_indices = @transform_10, window_bounds = array<i64: 128, 128>}]} {
    %c0 = arith.constant 0 : index
    %c0_0 = arith.constant 0 : index
    %0 = vector.load %arg2[%c0, %c0_0] : memref<128x128xbf16, #tpu.memory_space<vmem>>, vector<128x128xbf16>
    %1 = arith.extf %0 : vector<128x128xbf16> to vector<128x128xf32>
    %c0_1 = arith.constant 0 : index
    %c0_2 = arith.constant 0 : index
    %2 = vector.load %arg3[%c0_1, %c0_2] : memref<128x128xf32, #tpu.memory_space<vmem>>, vector<128x128xf32>
    %cst = arith.constant dense<0.000000e+00> : vector<128x128xf32>
    %3 = tpu.matmul %1, %2, %cst {dimension_numbers = #tpu.dot_dimension_numbers<[1], [0], [0], [1], [0, 0, 1, 1], [], []>} : vector<128x128xf32>, vector<128x128xf32>, vector<128x128xf32> -> vector<128x128xf32>
    %c0_i32 = arith.constant 0 : i32
    %4 = arith.cmpi eq, %arg1, %c0_i32 : i32
    %5 = arith.extui %4 : i1 to i32
    %c0_i32_3 = arith.constant 0 : i32
    %6 = arith.cmpi ne, %5, %c0_i32_3 : i32
    scf.if %6 {
      %c0_8 = arith.constant 0 : index
      %c0_9 = arith.constant 0 : index
      %13 = vector.load %arg12[%c0_8, %c0_9] : memref<128x128xf32, #tpu.memory_space<vmem>>, vector<128x128xf32>
      tpu.vector_store %arg12[%c0_8, %c0_9], %3 {strides = array<i32>} : memref<128x128xf32, #tpu.memory_space<vmem>>, vector<128x128xf32>,
    } else {
    }
    %c0_i32_4 = arith.constant 0 : i32
    %7 = arith.cmpi sgt, %arg1, %c0_i32_4 : i32
    %8 = arith.extui %7 : i1 to i32
    %c0_i32_5 = arith.constant 0 : i32
    %9 = arith.cmpi ne, %8, %c0_i32_5 : i32
    scf.if %9 {
      %c0_8 = arith.constant 0 : index
      %c0_9 = arith.constant 0 : index
      %13 = vector.load %arg12[%c0_8, %c0_9] : memref<128x128xf32, #tpu.memory_space<vmem>>, vector<128x128xf32>
      %14 = arith.addf %13, %3 : vector<128x128xf32>
      %c0_10 = arith.constant 0 : index
      %c0_11 = arith.constant 0 : index
      %15 = vector.load %arg12[%c0_10, %c0_11] : memref<128x128xf32, #tpu.memory_space<vmem>>, vector<128x128xf32>
      tpu.vector_store %arg12[%c0_10, %c0_11], %14 {strides = array<i32>} : memref<128x128xf32, #tpu.memory_space<vmem>>, vector<128x128xf32>,
    } else {
    }
    %c0_i32_6 = arith.constant 0 : i32
    %10 = arith.cmpi eq, %arg1, %c0_i32_6 : i32
    %11 = arith.extui %10 : i1 to i32
    %c0_i32_7 = arith.constant 0 : i32
    %12 = arith.cmpi ne, %11, %c0_i32_7 : i32
    scf.if %12 {
      %c0_8 = arith.constant 0 : index
      %c0_9 = arith.constant 0 : index
      %13 = vector.load %arg4[%c0_8, %c0_9] : memref<128x128xf32, #tpu.memory_space<vmem>>, vector<128x128xf32>
      %c0_10 = arith.constant 0 : index
      %c0_11 = arith.constant 0 : index
      %14 = vector.load %arg12[%c0_10, %c0_11] : memref<128x128xf32, #tpu.memory_space<vmem>>, vector<128x128xf32>
      %c0_12 = arith.constant 0 : index
      %c0_13 = arith.constant 0 : index
      %15 = vector.load %arg5[%c0_12, %c0_13] : memref<128x1xf32, #tpu.memory_space<vmem>>, vector<128x1xf32>
      %cst_14 = arith.constant 1.000000e+00 : f32
      %16 = vector.broadcast %cst_14 : f32 to vector<128x1xf32>
      %17 = arith.maximumf %15, %16 : vector<128x1xf32>
      %18 = vector.broadcast %17 : vector<128x1xf32> to vector<128x128xf32>
      %19 = arith.divf %14, %18 : vector<128x128xf32>
      %20 = arith.subf %13, %19 : vector<128x128xf32>
      %21 = arith.mulf %20, %20 : vector<128x128xf32>
      %cst_15 = arith.constant dense<0.000000e+00> : vector<128xf32>
      %22 = vector.multi_reduction <add>, %21, %cst_15 [1] : vector<128x128xf32> to vector<128xf32>
      %23 = vector.shape_cast %22 : vector<128xf32> to vector<128x1xf32>
      %24 = math.sqrt %23 : vector<128x1xf32>
      %25 = math.tanh %24 : vector<128x1xf32>
      %c0_16 = arith.constant 0 : index
      %c0_17 = arith.constant 0 : index
      %26 = vector.load %arg6[%c0_16, %c0_17] : memref<128x128xf32, #tpu.memory_space<vmem>>, vector<128x128xf32>
      %cst_18 = arith.constant dense<0.000000e+00> : vector<128x128xf32>
      %27 = tpu.matmul %13, %26, %cst_18 {dimension_numbers = #tpu.dot_dimension_numbers<[1], [0], [0], [1], [0, 0, 1, 1], [], []>} : vector<128x128xf32>, vector<128x128xf32>, vector<128x128xf32> -> vector<128x128xf32>
      %c0_19 = arith.constant 0 : index
      %c0_20 = arith.constant 0 : index
      %28 = vector.load %arg7[%c0_19, %c0_20] : memref<1x128xf32, #tpu.memory_space<vmem>>, vector<1x128xf32>
      %29 = vector.broadcast %28 : vector<1x128xf32> to vector<128x128xf32>
      %30 = arith.addf %27, %29 : vector<128x128xf32>
      %cst_21 = arith.constant 0.000000e+00 : f32
      %31 = vector.broadcast %cst_21 : f32 to vector<128x128xf32>
      %32 = arith.maximumf %30, %31 : vector<128x128xf32>
      %c0_22 = arith.constant 0 : index
      %c0_23 = arith.constant 0 : index
      %33 = vector.load %arg8[%c0_22, %c0_23] : memref<128x128xf32, #tpu.memory_space<vmem>>, vector<128x128xf32>
      %cst_24 = arith.constant dense<0.000000e+00> : vector<128x128xf32>
      %34 = tpu.matmul %32, %33, %cst_24 {dimension_numbers = #tpu.dot_dimension_numbers<[1], [0], [0], [1], [0, 0, 1, 1], [], []>} : vector<128x128xf32>, vector<128x128xf32>, vector<128x128xf32> -> vector<128x128xf32>
      %c0_25 = arith.constant 0 : index
      %c0_26 = arith.constant 0 : index
      %35 = vector.load %arg9[%c0_25, %c0_26] : memref<1x128xf32, #tpu.memory_space<vmem>>, vector<1x128xf32>
      %36 = vector.broadcast %35 : vector<1x128xf32> to vector<128x128xf32>
      %37 = arith.addf %34, %36 : vector<128x128xf32>
      %cst_27 = arith.constant 2.000000e-01 : f32
      %38 = vector.broadcast %cst_27 : f32 to vector<128x128xf32>
      %39 = arith.mulf %38, %37 : vector<128x128xf32>
      %40 = vector.broadcast %25 : vector<128x1xf32> to vector<128x128xf32>
      %41 = arith.mulf %39, %40 : vector<128x128xf32>
      %42 = arith.addf %13, %41 : vector<128x128xf32>
      %43 = tpu.iota {dimensions = array<i32: 1>} : vector<128x128xi32>
      %c32_i32 = arith.constant 32 : i32
      %44 = vector.broadcast %c32_i32 : i32 to vector<128x128xi32>
      %45 = arith.cmpi slt, %43, %44 : vector<128x128xi32>
      %cst_28 = arith.constant dense<0.000000e+00> : vector<128xf32>
      %46 = vector.multi_reduction <add>, %42, %cst_28 [1] : vector<128x128xf32> to vector<128xf32>
      %47 = vector.shape_cast %46 : vector<128xf32> to vector<128x1xf32>
      %cst_29 = arith.constant 3.125000e-02 : f32
      %48 = vector.broadcast %cst_29 : f32 to vector<128x1xf32>
      %49 = arith.mulf %47, %48 : vector<128x1xf32>
      %50 = vector.broadcast %49 : vector<128x1xf32> to vector<128x128xf32>
      %51 = arith.subf %42, %50 : vector<128x128xf32>
      %cst_30 = arith.constant 0.000000e+00 : f32
      %52 = vector.broadcast %cst_30 : f32 to vector<128x128xf32>
      %53 = arith.select %45, %51, %52 : vector<128x128xi1>, vector<128x128xf32>
      %54 = arith.mulf %53, %53 : vector<128x128xf32>
      %cst_31 = arith.constant dense<0.000000e+00> : vector<128xf32>
      %55 = vector.multi_reduction <add>, %54, %cst_31 [1] : vector<128x128xf32> to vector<128xf32>
      %56 = vector.shape_cast %55 : vector<128xf32> to vector<128x1xf32>
      %cst_32 = arith.constant 3.125000e-02 : f32
      %57 = vector.broadcast %cst_32 : f32 to vector<128x1xf32>
      %58 = arith.mulf %56, %57 : vector<128x1xf32>
      %cst_33 = arith.constant 9.99999974E-6 : f32
      %59 = vector.broadcast %cst_33 : f32 to vector<128x1xf32>
      %60 = arith.addf %58, %59 : vector<128x1xf32>
      %61 = math.rsqrt %60 : vector<128x1xf32>
      %62 = vector.broadcast %61 : vector<128x1xf32> to vector<128x128xf32>
      %63 = arith.mulf %53, %62 : vector<128x128xf32>
      %c0_34 = arith.constant 0 : index
      %c0_35 = arith.constant 0 : index
      %64 = vector.load %arg10[%c0_34, %c0_35] : memref<1x128xf32, #tpu.memory_space<vmem>>, vector<1x128xf32>
      %65 = vector.broadcast %64 : vector<1x128xf32> to vector<128x128xf32>
      %66 = arith.mulf %63, %65 : vector<128x128xf32>
      %c0_36 = arith.constant 0 : index
      %c0_37 = arith.constant 0 : index
      %67 = vector.load %arg11[%c0_36, %c0_37] : memref<1x128xf32, #tpu.memory_space<vmem>>, vector<1x128xf32>
      %68 = vector.broadcast %67 : vector<1x128xf32> to vector<128x128xf32>
      %69 = arith.addf %66, %68 : vector<128x128xf32>
      %c0_38 = arith.constant 0 : index
      %c0_39 = arith.constant 0 : index
      %70 = vector.load %arg12[%c0_38, %c0_39] : memref<128x128xf32, #tpu.memory_space<vmem>>, vector<128x128xf32>
      tpu.vector_store %arg12[%c0_38, %c0_39], %69 {strides = array<i32>} : memref<128x128xf32, #tpu.memory_space<vmem>>, vector<128x128xf32>,
    } else {
    }
    return
  }
  func.func @transform_0(%arg0: i32, %arg1: i32) -> (i32, i32) {
    %c0_i32 = arith.constant 0 : i32
    return %arg0, %arg1 : i32, i32
  }
  func.func @transform_1(%arg0: i32, %arg1: i32) -> (i32, i32) {
    %c0_i32 = arith.constant 0 : i32
    %c0_i32_0 = arith.constant 0 : i32
    return %arg1, %c0_i32 : i32, i32
  }
  func.func @transform_2(%arg0: i32, %arg1: i32) -> (i32, i32) {
    %c0_i32 = arith.constant 0 : i32
    %c0_i32_0 = arith.constant 0 : i32
    return %arg0, %c0_i32 : i32, i32
  }
  func.func @transform_3(%arg0: i32, %arg1: i32) -> (i32, i32) {
    %c0_i32 = arith.constant 0 : i32
    %c0_i32_0 = arith.constant 0 : i32
    return %arg0, %c0_i32 : i32, i32
  }
  func.func @transform_4(%arg0: i32, %arg1: i32) -> (i32, i32) {
    %c0_i32 = arith.constant 0 : i32
    %c0_i32_0 = arith.constant 0 : i32
    %c0_i32_1 = arith.constant 0 : i32
    return %c0_i32, %c0_i32_0 : i32, i32
  }
  func.func @transform_5(%arg0: i32, %arg1: i32) -> (i32, i32) {
    %c0_i32 = arith.constant 0 : i32
    %c0_i32_0 = arith.constant 0 : i32
    %c0_i32_1 = arith.constant 0 : i32
    return %c0_i32, %c0_i32_0 : i32, i32
  }
  func.func @transform_6(%arg0: i32, %arg1: i32) -> (i32, i32) {
    %c0_i32 = arith.constant 0 : i32
    %c0_i32_0 = arith.constant 0 : i32
    %c0_i32_1 = arith.constant 0 : i32
    return %c0_i32, %c0_i32_0 : i32, i32
  }
  func.func @transform_7(%arg0: i32, %arg1: i32) -> (i32, i32) {
    %c0_i32 = arith.constant 0 : i32
    %c0_i32_0 = arith.constant 0 : i32
    %c0_i32_1 = arith.constant 0 : i32
    return %c0_i32, %c0_i32_0 : i32, i32
  }
  func.func @transform_8(%arg0: i32, %arg1: i32) -> (i32, i32) {
    %c0_i32 = arith.constant 0 : i32
    %c0_i32_0 = arith.constant 0 : i32
    %c0_i32_1 = arith.constant 0 : i32
    return %c0_i32, %c0_i32_0 : i32, i32
  }
  func.func @transform_9(%arg0: i32, %arg1: i32) -> (i32, i32) {
    %c0_i32 = arith.constant 0 : i32
    %c0_i32_0 = arith.constant 0 : i32
    %c0_i32_1 = arith.constant 0 : i32
    return %c0_i32, %c0_i32_0 : i32, i32
  }
  func.func @transform_10(%arg0: i32, %arg1: i32) -> (i32, i32) {
    %c0_i32 = arith.constant 0 : i32
    %c0_i32_0 = arith.constant 0 : i32
    return %arg0, %c0_i32 : i32, i32
  }
}

</mosaic_0001>

<llo_original>
// kernel: tpu_custom_call.1
$region0: #{tpu_custom_call.1}
  #allocation0 [shape = 'u32[]', space=smem, size = 0x4, offset = 0x4, fixed_abs, tag = 'smem constant byte address 0x4 - core index']
  #allocation1 [shape = 'u32[72,128]{1,0:T(1,128)}', space=vmem, size = 0x9000, scoped, tag = 'internal scratch']
  %s0 = inlined_call_operand.hbm [shape: bf16[128,128], index: 0, kind: input, shape index: {}]
  %s1 = inlined_call_operand.vmem [shape: f32[128,128], index: 1, kind: input, shape index: {}]
  %s2 = inlined_call_operand.hbm [shape: f32[128,128], index: 2, kind: input, shape index: {}]
  %s3 = inlined_call_operand.vmem [shape: f32[128,1], index: 3, kind: input, shape index: {}]
  %s4 = inlined_call_operand.hbm [shape: f32[128,128], index: 4, kind: input, shape index: {}]
  %s5 = inlined_call_operand.vmem [shape: f32[1,128], index: 5, kind: input, shape index: {}]
  %s6 = inlined_call_operand.hbm [shape: f32[128,128], index: 6, kind: input, shape index: {}]
  %s7 = inlined_call_operand.vmem [shape: f32[1,128], index: 7, kind: input, shape index: {}]
  %s8 = inlined_call_operand.vmem [shape: f32[1,128], index: 8, kind: input, shape index: {}]
  %s9 = inlined_call_operand.vmem [shape: f32[1,128], index: 9, kind: input, shape index: {}]
  %s10 = inlined_call_operand.hbm [shape: f32[128,128], index: 10, kind: output, shape index: {}]
  %s11 = sld [smem:[#allocation0]]
  $region78: #{tpu_custom_call.1} parent=0
    _
  %s13 = ssub.s32 1, %s11
  %s14 = scalar_select 0, %s13, %s11
  $region1: #{tpu_custom_call.1} parent=0
    #allocation2 [shape = 'u8[32768]{0}', space=vmem, size = 0x8000, scoped, tag = 'input window, operand 0, single buffered']
    #allocation3 [shape = 's32[1]{0}', space=sflag, size = 0x4, scoped, tag = 'scoped memory for tpu_custom_call.1']
    #allocation4 [shape = 's32[1]{0}', space=sflag, size = 0x4, scoped, tag = 'scoped memory for tpu_custom_call.1']
    #allocation5 [shape = 'u8[65536]{0}', space=vmem, size = 0x10000, scoped, tag = 'input window, operand 2, single buffered']
    #allocation6 [shape = 's32[1]{0}', space=sflag, size = 0x4, scoped, tag = 'scoped memory for tpu_custom_call.1']
    #allocation7 [shape = 'u8[65536]{0}', space=vmem, size = 0x10000, scoped, tag = 'input window, operand 4, single buffered']
    #allocation8 [shape = 'u8[65536]{0}', space=vmem, size = 0x10000, scoped, tag = 'input window, operand 6, single buffered']
    #allocation9 [shape = 's32[1]{0}', space=sflag, size = 0x4, scoped, tag = 'scoped memory for tpu_custom_call.1']
    #allocation10 [shape = 'u8[65536]{0}', space=vmem, size = 0x10000, scoped, tag = 'output window, operand 0, single buffered']
    %15 = vsyncpa [#allocation3], 0
    %16 = vsyncpa [#allocation6], 0
    %17 = vsyncpa [#allocation9], 0
    %18 = vsyncpa [#allocation4], 0
    // Predicated region
    $region2: #{tpu_custom_call.1} parent=1 // pred_check
      _
    $region3: #{tpu_custom_call.1} parent=1 // pred_check_branch
      %20 = sbr.rel (0) target = $region5
    $region4: #{tpu_custom_call.1} parent=1 // pred_region
      %22 = vsyncadd [#allocation3], 0
      %s23 = sshll.u32 %s0, 4
      %s24 = int_to_ptr.hbm [resolvable:$true] %s23
      %s25 = sshll.u32 [#allocation2], 4
      %s26 = int_to_ptr.vmem [resolvable:$true] %s25
      %31 = dma.hbm_to_vmem [thread:$0]  %s24, 1024, %s26, [#allocation3], 64, 64, 4
    $region5: #{tpu_custom_call.1} parent=1 // pred_fallthru
      _
    // Predicated region
    $region6: #{tpu_custom_call.1} parent=1 // pred_check
      _
    $region7: #{tpu_custom_call.1} parent=1 // pred_check_branch
      %33 = sbr.rel (0) target = $region9
    $region8: #{tpu_custom_call.1} parent=1 // pred_region
      _
    $region9: #{tpu_custom_call.1} parent=1 // pred_fallthru
      _
    // Predicated region
    $region10: #{tpu_custom_call.1} parent=1 // pred_check
      _
    $region11: #{tpu_custom_call.1} parent=1 // pred_check_branch
      %35 = sbr.rel (0) target = $region13
    $region12: #{tpu_custom_call.1} parent=1 // pred_region
      %37 = vsyncadd [#allocation6], 0
      %s38 = sshll.u32 %s2, 4
      %s39 = int_to_ptr.hbm [resolvable:$true] %s38
      %s40 = sshll.u32 [#allocation5], 4
      %s41 = int_to_ptr.vmem [resolvable:$true] %s40
      %46 = dma.hbm_to_vmem [thread:$0]  %s39, 2048, %s41, [#allocation6], 128, 128, 8
    $region13: #{tpu_custom_call.1} parent=1 // pred_fallthru
      _
    // Predicated region
    $region14: #{tpu_custom_call.1} parent=1 // pred_check
      _
    $region15: #{tpu_custom_call.1} parent=1 // pred_check_branch
      %48 = sbr.rel (0) target = $region17
    $region16: #{tpu_custom_call.1} parent=1 // pred_region
      _
    $region17: #{tpu_custom_call.1} parent=1 // pred_fallthru
      _
    // Predicated region
    $region18: #{tpu_custom_call.1} parent=1 // pred_check
      _
    $region19: #{tpu_custom_call.1} parent=1 // pred_check_branch
      %50 = sbr.rel (0) target = $region21
    $region20: #{tpu_custom_call.1} parent=1 // pred_region
      %52 = vsyncadd [#allocation6], 0
      %s53 = sshll.u32 %s4, 4
      %s54 = int_to_ptr.hbm [resolvable:$true] %s53
      %s55 = sshll.u32 [#allocation7], 4
      %s56 = int_to_ptr.vmem [resolvable:$true] %s55
      %61 = dma.hbm_to_vmem [thread:$0]  %s54, 2048, %s56, [#allocation6], 128, 128, 8
    $region21: #{tpu_custom_call.1} parent=1 // pred_fallthru
      _
    // Predicated region
    $region22: #{tpu_custom_call.1} parent=1 // pred_check
      _
    $region23: #{tpu_custom_call.1} parent=1 // pred_check_branch
      %63 = sbr.rel (0) target = $region25
    $region24: #{tpu_custom_call.1} parent=1 // pred_region
      _
    $region25: #{tpu_custom_call.1} parent=1 // pred_fallthru
      _
    // Predicated region
    $region26: #{tpu_custom_call.1} parent=1 // pred_check
      _
    $region27: #{tpu_custom_call.1} parent=1 // pred_check_branch
      %65 = sbr.rel (0) target = $region29
    $region28: #{tpu_custom_call.1} parent=1 // pred_region
      %67 = vsyncadd [#allocation9], 0
      %s68 = sshll.u32 %s6, 4
      %s69 = int_to_ptr.hbm [resolvable:$true] %s68
      %s70 = sshll.u32 [#allocation8], 4
      %s71 = int_to_ptr.vmem [resolvable:$true] %s70
      %76 = dma.hbm_to_vmem [thread:$0]  %s69, 2048, %s71, [#allocation9], 128, 128, 8
    $region29: #{tpu_custom_call.1} parent=1 // pred_fallthru
      _
    // Predicated region
    $region30: #{tpu_custom_call.1} parent=1 // pred_check
      _
    $region31: #{tpu_custom_call.1} parent=1 // pred_check_branch
      %78 = sbr.rel (0) target = $region33
    $region32: #{tpu_custom_call.1} parent=1 // pred_region
      _
    $region33: #{tpu_custom_call.1} parent=1 // pred_fallthru
      _
    // Predicated region
    $region34: #{tpu_custom_call.1} parent=1 // pred_check
      _
    $region35: #{tpu_custom_call.1} parent=1 // pred_check_branch
      %80 = sbr.rel (0) target = $region37
    $region36: #{tpu_custom_call.1} parent=1 // pred_region
      _
    $region37: #{tpu_custom_call.1} parent=1 // pred_fallthru
      _
    // Predicated region
    $region38: #{tpu_custom_call.1} parent=1 // pred_check
      _
    $region39: #{tpu_custom_call.1} parent=1 // pred_check_branch
      %82 = sbr.rel (0) target = $region41
    $region40: #{tpu_custom_call.1} parent=1 // pred_region
      _
    $region41: #{tpu_custom_call.1} parent=1 // pred_fallthru
      _
    // Predicated region
    $region42: #{tpu_custom_call.1} parent=1 // pred_check
      _
    $region43: #{tpu_custom_call.1} parent=1 // pred_check_branch
      %84 = sbr.rel (0) target = $region45
    $region44: #{tpu_custom_call.1} parent=1 // pred_region
      %86 = dma.done [#allocation3], 1024
    $region45: #{tpu_custom_call.1} parent=1 // pred_fallthru
      _
    // Predicated region
    $region46: #{tpu_custom_call.1} parent=1 // pred_check
      _
    $region47: #{tpu_custom_call.1} parent=1 // pred_check_branch
      %88 = sbr.rel (0) target = $region49
    $region48: #{tpu_custom_call.1} parent=1 // pred_region
      %90 = dma.done [#allocation6], 2048
    $region49: #{tpu_custom_call.1} parent=1 // pred_fallthru
      _
    // Predicated region
    $region50: #{tpu_custom_call.1} parent=1 // pred_check
      _
    $region51: #{tpu_custom_call.1} parent=1 // pred_check_branch
      %92 = sbr.rel (0) target = $region53
    $region52: #{tpu_custom_call.1} parent=1 // pred_region
      %94 = dma.done [#allocation6], 2048
    $region53: #{tpu_custom_call.1} parent=1 // pred_fallthru
      _
    // Predicated region
    $region54: #{tpu_custom_call.1} parent=1 // pred_check
      _
    $region55: #{tpu_custom_call.1} parent=1 // pred_check_branch
      %96 = sbr.rel (0) target = $region57
    $region56: #{tpu_custom_call.1} parent=1 // pred_region
      %98 = dma.done [#allocation9], 2048
    $region57: #{tpu_custom_call.1} parent=1 // pred_fallthru
      _
    %v99 = vld [vmem:[#allocation2] sm:$0xf]
    %v100 = vld [vmem:[#allocation2 + $0x4] sm:$0xf]
    %v101 = vld [vmem:[#allocation2 + $0x8] sm:$0xf]
    %v102 = vld [vmem:[#allocation2 + $0xc] sm:$0xf]
    %v103 = vld [vmem:[#allocation2 + $0x10] sm:$0xf]
    %v104 = vld [vmem:[#allocation2 + $0x14] sm:$0xf]
    %v105 = vld [vmem:[#allocation2 + $0x18] sm:$0xf]
    %v106 = vld [vmem:[#allocation2 + $0x1c] sm:$0xf]
    %v107 = vld [vmem:[#allocation2 + $0x20] sm:$0xf]
    %v108 = vld [vmem:[#allocation2 + $0x24] sm:$0xf]
    %v109 = vld [vmem:[#allocation2 + $0x28] sm:$0xf]
    %v110 = vld [vmem:[#allocation2 + $0x2c] sm:$0xf]
    %v111 = vld [vmem:[#allocation2 + $0x30] sm:$0xf]
    %v112 = vld [vmem:[#allocation2 + $0x34] sm:$0xf]
    %v113 = vld [vmem:[#allocation2 + $0x38] sm:$0xf]
    %v114 = vld [vmem:[#allocation2 + $0x3c] sm:$0xf]
    %v115 = vunpack.c.l.bf16 %v99
    %v116 = vunpack.c.l.bf16 %v100
    %v117 = vunpack.c.l.bf16 %v101
    %v118 = vunpack.c.l.bf16 %v102
    %v119 = vunpack.c.l.bf16 %v103
    %v120 = vunpack.c.l.bf16 %v104
    %v121 = vunpack.c.l.bf16 %v105
    %v122 = vunpack.c.l.bf16 %v106
    %v123 = vunpack.c.l.bf16 %v107
    %v124 = vunpack.c.l.bf16 %v108
    %v125 = vunpack.c.l.bf16 %v109
    %v126 = vunpack.c.l.bf16 %v110
    %v127 = vunpack.c.l.bf16 %v111
    %v128 = vunpack.c.l.bf16 %v112
    %v129 = vunpack.c.l.bf16 %v113
    %v130 = vunpack.c.l.bf16 %v114
    %v131 = vld [vmem:[%s1] sm:$0xff]
    %v132 = vld [vmem:[%s1 + $0x8] sm:$0xff]
    %v133 = vld [vmem:[%s1 + $0x10] sm:$0xff]
    %v134 = vld [vmem:[%s1 + $0x18] sm:$0xff]
    %v135 = vld [vmem:[%s1 + $0x20] sm:$0xff]
    %v136 = vld [vmem:[%s1 + $0x28] sm:$0xff]
    %v137 = vld [vmem:[%s1 + $0x30] sm:$0xff]
    %v138 = vld [vmem:[%s1 + $0x38] sm:$0xff]
    %v139 = vld [vmem:[%s1 + $0x40] sm:$0xff]
    %v140 = vld [vmem:[%s1 + $0x48] sm:$0xff]
    %v141 = vld [vmem:[%s1 + $0x50] sm:$0xff]
    %v142 = vld [vmem:[%s1 + $0x58] sm:$0xff]
    %v143 = vld [vmem:[%s1 + $0x60] sm:$0xff]
    %v144 = vld [vmem:[%s1 + $0x68] sm:$0xff]
    %v145 = vld [vmem:[%s1 + $0x70] sm:$0xff]
    %v146 = vld [vmem:[%s1 + $0x78] sm:$0xff]
    %147 = vmatpush.msra.mxu0 %v146
    %148 = vmatpush.msra.mxu0 %v145
    %149 = vmatpush.msra.mxu0 %v144
    %150 = vmatpush.msra.mxu0 %v143
    %151 = vmatpush.msra.mxu0 %v142
    %152 = vmatpush.msra.mxu0 %v141
    %153 = vmatpush.msra.mxu0 %v140
    %154 = vmatpush.msra.mxu0 %v139
    %155 = vmatpush.msra.mxu0 %v138
    %156 = vmatpush.msra.mxu0 %v137
    %157 = vmatpush.msra.mxu0 %v136
    %158 = vmatpush.msra.mxu0 %v135
    %159 = vmatpush.msra.mxu0 %v134
    %160 = vmatpush.msra.mxu0 %v133
    %161 = vmatpush.msra.mxu0 %v132
    %162 = vmatpush.msra.mxu0 %v131
    %163 = vmatmul.f32.gmra.mxu0 %v115
    %v164 = vpop.f32.mrf.mxu0
    %v165 = vadd.f32 0.0, %v164
    %166 = vmatmul.f32.gmra.mxu0 %v116
    %v167 = vpop.f32.mrf.mxu0
    %v168 = vadd.f32 0.0, %v167
    %169 = vmatmul.f32.gmra.mxu0 %v117
    %v170 = vpop.f32.mrf.mxu0
    %v171 = vadd.f32 0.0, %v170
    %172 = vmatmul.f32.gmra.mxu0 %v118
    %v173 = vpop.f32.mrf.mxu0
    %v174 = vadd.f32 0.0, %v173
    %175 = vmatmul.f32.gmra.mxu0 %v119
    %v176 = vpop.f32.mrf.mxu0
    %v177 = vadd.f32 0.0, %v176
    %178 = vmatmul.f32.gmra.mxu0 %v120
    %v179 = vpop.f32.mrf.mxu0
    %v180 = vadd.f32 0.0, %v179
    %181 = vmatmul.f32.gmra.mxu0 %v121
    %v182 = vpop.f32.mrf.mxu0
    %v183 = vadd.f32 0.0, %v182
    %184 = vmatmul.f32.gmra.mxu0 %v122
    %v185 = vpop.f32.mrf.mxu0
    %v186 = vadd.f32 0.0, %v185
    %187 = vmatmul.f32.gmra.mxu0 %v123
    %v188 = vpop.f32.mrf.mxu0
    %v189 = vadd.f32 0.0, %v188
    %190 = vmatmul.f32.gmra.mxu0 %v124
    %v191 = vpop.f32.mrf.mxu0
    %v192 = vadd.f32 0.0, %v191
    %193 = vmatmul.f32.gmra.mxu0 %v125
    %v194 = vpop.f32.mrf.mxu0
    %v195 = vadd.f32 0.0, %v194
    %196 = vmatmul.f32.gmra.mxu0 %v126
    %v197 = vpop.f32.mrf.mxu0
    %v198 = vadd.f32 0.0, %v197
    %199 = vmatmul.f32.gmra.mxu0 %v127
    %v200 = vpop.f32.mrf.mxu0
    %v201 = vadd.f32 0.0, %v200
    %202 = vmatmul.f32.gmra.mxu0 %v128
    %v203 = vpop.f32.mrf.mxu0
    %v204 = vadd.f32 0.0, %v203
    %205 = vmatmul.f32.gmra.mxu0 %v129
    %v206 = vpop.f32.mrf.mxu0
    %v207 = vadd.f32 0.0, %v206
    %208 = vmatmul.f32.gmra.mxu0 %v130
    %v209 = vpop.f32.mrf.mxu0
    %v210 = vadd.f32 0.0, %v209
    %211 = vdwg.mxu0
    %p212 = scmp.eq.s32.totalorder 0, 0
    // Predicated region
    $region58: #{tpu_custom_call.1} parent=1 // pred_check
      %p213 = pneg %p212
    $region59: #{tpu_custom_call.1} parent=1 // pred_check_branch
      %215 = sbr.rel (%p213) target = $region61
    $region60: #{tpu_custom_call.1} parent=1 // pred_region
      %216 = vst [vmem:[#allocation10] sm:$0xff] %v165
      %217 = vst [vmem:[#allocation10 + $0x8] sm:$0xff] %v168
      %218 = vst [vmem:[#allocation10 + $0x10] sm:$0xff] %v171
      %219 = vst [vmem:[#allocation10 + $0x18] sm:$0xff] %v174
      %220 = vst [vmem:[#allocation10 + $0x20] sm:$0xff] %v177
      %221 = vst [vmem:[#allocation10 + $0x28] sm:$0xff] %v180
      %222 = vst [vmem:[#allocation10 + $0x30] sm:$0xff] %v183
      %223 = vst [vmem:[#allocation10 + $0x38] sm:$0xff] %v186
      %224 = vst [vmem:[#allocation10 + $0x40] sm:$0xff] %v189
      %225 = vst [vmem:[#allocation10 + $0x48] sm:$0xff] %v192
      %226 = vst [vmem:[#allocation10 + $0x50] sm:$0xff] %v195
      %227 = vst [vmem:[#allocation10 + $0x58] sm:$0xff] %v198
      %228 = vst [vmem:[#allocation10 + $0x60] sm:$0xff] %v201
      %229 = vst [vmem:[#allocation10 + $0x68] sm:$0xff] %v204
      %230 = vst [vmem:[#allocation10 + $0x70] sm:$0xff] %v207
      %231 = vst [vmem:[#allocation10 + $0x78] sm:$0xff] %v210
    $region61: #{tpu_custom_call.1} parent=1 // pred_fallthru
      _
    %p232 = scmp.gt.s32.totalorder 0, 0
    // Predicated region
    $region62: #{tpu_custom_call.1} parent=1 // pred_check
      %p233 = pneg %p232
    $region63: #{tpu_custom_call.1} parent=1 // pred_check_branch
      %235 = sbr.rel (%p233) target = $region65
    $region64: #{tpu_custom_call.1} parent=1 // pred_region
      %v236 = vld [vmem:[#allocation10] sm:$0xff]
      %v237 = vld [vmem:[#allocation10 + $0x8] sm:$0xff]
      %v238 = vld [vmem:[#allocation10 + $0x10] sm:$0xff]
      %v239 = vld [vmem:[#allocation10 + $0x18] sm:$0xff]
      %v240 = vld [vmem:[#allocation10 + $0x20] sm:$0xff]
      %v241 = vld [vmem:[#allocation10 + $0x28] sm:$0xff]
      %v242 = vld [vmem:[#allocation10 + $0x30] sm:$0xff]
      %v243 = vld [vmem:[#allocation10 + $0x38] sm:$0xff]
      %v244 = vld [vmem:[#allocation10 + $0x40] sm:$0xff]
      %v245 = vld [vmem:[#allocation10 + $0x48] sm:$0xff]
      %v246 = vld [vmem:[#allocation10 + $0x50] sm:$0xff]
      %v247 = vld [vmem:[#allocation10 + $0x58] sm:$0xff]
      %v248 = vld [vmem:[#allocation10 + $0x60] sm:$0xff]
      %v249 = vld [vmem:[#allocation10 + $0x68] sm:$0xff]
      %v250 = vld [vmem:[#allocation10 + $0x70] sm:$0xff]
      %v251 = vld [vmem:[#allocation10 + $0x78] sm:$0xff]
      %v252 = vadd.f32 %v236, %v165
      %v253 = vadd.f32 %v237, %v168
      %v254 = vadd.f32 %v238, %v171
      %v255 = vadd.f32 %v239, %v174
      %v256 = vadd.f32 %v240, %v177
      %v257 = vadd.f32 %v241, %v180
      %v258 = vadd.f32 %v242, %v183
      %v259 = vadd.f32 %v243, %v186
      %v260 = vadd.f32 %v244, %v189
      %v261 = vadd.f32 %v245, %v192
      %v262 = vadd.f32 %v246, %v195
      %v263 = vadd.f32 %v247, %v198
      %v264 = vadd.f32 %v248, %v201
      %v265 = vadd.f32 %v249, %v204
      %v266 = vadd.f32 %v250, %v207
      %v267 = vadd.f32 %v251, %v210
      %268 = vst [vmem:[#allocation10] sm:$0xff] %v252
      %269 = vst [vmem:[#allocation10 + $0x8] sm:$0xff] %v253
      %270 = vst [vmem:[#allocation10 + $0x10] sm:$0xff] %v254
      %271 = vst [vmem:[#allocation10 + $0x18] sm:$0xff] %v255
      %272 = vst [vmem:[#allocation10 + $0x20] sm:$0xff] %v256
      %273 = vst [vmem:[#allocation10 + $0x28] sm:$0xff] %v257
      %274 = vst [vmem:[#allocation10 + $0x30] sm:$0xff] %v258
      %275 = vst [vmem:[#allocation10 + $0x38] sm:$0xff] %v259
      %276 = vst [vmem:[#allocation10 + $0x40] sm:$0xff] %v260
      %277 = vst [vmem:[#allocation10 + $0x48] sm:$0xff] %v261
      %278 = vst [vmem:[#allocation10 + $0x50] sm:$0xff] %v262
      %279 = vst [vmem:[#allocation10 + $0x58] sm:$0xff] %v263
      %280 = vst [vmem:[#allocation10 + $0x60] sm:$0xff] %v264
      %281 = vst [vmem:[#allocation10 + $0x68] sm:$0xff] %v265
      %282 = vst [vmem:[#allocation10 + $0x70] sm:$0xff] %v266
      %283 = vst [vmem:[#allocation10 + $0x78] sm:$0xff] %v267
    $region65: #{tpu_custom_call.1} parent=1 // pred_fallthru
      _
    // Predicated region
    $region66: #{tpu_custom_call.1} parent=1 // pred_check
      %p284 = pneg %p212
    $region67: #{tpu_custom_call.1} parent=1 // pred_check_branch
      %286 = sbr.rel (%p284) target = $region69
    $region68: #{tpu_custom_call.1} parent=1 // pred_region
      %v287 = vld [vmem:[#allocation5] sm:$0xff]
      %v288 = vld [vmem:[#allocation5 + $0x8] sm:$0xff]
      %v289 = vld [vmem:[#allocation5 + $0x10] sm:$0xff]
      %v290 = vld [vmem:[#allocation5 + $0x18] sm:$0xff]
      %v291 = vld [vmem:[#allocation5 + $0x20] sm:$0xff]
      %v292 = vld [vmem:[#allocation5 + $0x28] sm:$0xff]
      %v293 = vld [vmem:[#allocation5 + $0x30] sm:$0xff]
      %v294 = vld [vmem:[#allocation5 + $0x38] sm:$0xff]
      %v295 = vld [vmem:[#allocation5 + $0x40] sm:$0xff]
      %v296 = vld [vmem:[#allocation5 + $0x48] sm:$0xff]
      %v297 = vld [vmem:[#allocation5 + $0x50] sm:$0xff]
      %v298 = vld [vmem:[#allocation5 + $0x58] sm:$0xff]
      %v299 = vld [vmem:[#allocation5 + $0x60] sm:$0xff]
      %v300 = vld [vmem:[#allocation5 + $0x68] sm:$0xff]
      %v301 = vld [vmem:[#allocation5 + $0x70] sm:$0xff]
      %v302 = vld [vmem:[#allocation5 + $0x78] sm:$0xff]
      %v303 = vld [vmem:[#allocation10] sm:$0xff]
      %v304 = vld [vmem:[#allocation10 + $0x8] sm:$0xff]
      %v305 = vld [vmem:[#allocation10 + $0x10] sm:$0xff]
      %v306 = vld [vmem:[#allocation10 + $0x18] sm:$0xff]
      %v307 = vld [vmem:[#allocation10 + $0x20] sm:$0xff]
      %v308 = vld [vmem:[#allocation10 + $0x28] sm:$0xff]
      %v309 = vld [vmem:[#allocation10 + $0x30] sm:$0xff]
      %v310 = vld [vmem:[#allocation10 + $0x38] sm:$0xff]
      %v311 = vld [vmem:[#allocation10 + $0x40] sm:$0xff]
      %v312 = vld [vmem:[#allocation10 + $0x48] sm:$0xff]
      %v313 = vld [vmem:[#allocation10 + $0x50] sm:$0xff]
      %v314 = vld [vmem:[#allocation10 + $0x58] sm:$0xff]
      %v315 = vld [vmem:[#allocation10 + $0x60] sm:$0xff]
      %v316 = vld [vmem:[#allocation10 + $0x68] sm:$0xff]
      %v317 = vld [vmem:[#allocation10 + $0x70] sm:$0xff]
      %v318 = vld [vmem:[#allocation10 + $0x78] sm:$0xff]
      %v319 = vld [vmem:[%s3] sm:$0xff]
      %v320 = vld [vmem:[%s3 + $0x8] sm:$0xff]
      %v321 = vld [vmem:[%s3 + $0x10] sm:$0xff]
      %v322 = vld [vmem:[%s3 + $0x18] sm:$0xff]
      %v323 = vld [vmem:[%s3 + $0x20] sm:$0xff]
      %v324 = vld [vmem:[%s3 + $0x28] sm:$0xff]
      %v325 = vld [vmem:[%s3 + $0x30] sm:$0xff]
      %v326 = vld [vmem:[%s3 + $0x38] sm:$0xff]
      %v327 = vld [vmem:[%s3 + $0x40] sm:$0xff]
      %v328 = vld [vmem:[%s3 + $0x48] sm:$0xff]
      %v329 = vld [vmem:[%s3 + $0x50] sm:$0xff]
      %v330 = vld [vmem:[%s3 + $0x58] sm:$0xff]
      %v331 = vld [vmem:[%s3 + $0x60] sm:$0xff]
      %v332 = vld [vmem:[%s3 + $0x68] sm:$0xff]
      %v333 = vld [vmem:[%s3 + $0x70] sm:$0xff]
      %v334 = vld [vmem:[%s3 + $0x78] sm:$0xff]
      %v335 = vmax.f32 %v319, 1.0
      %v336 = vmax.f32 %v320, 1.0
      %v337 = vmax.f32 %v321, 1.0
      %v338 = vmax.f32 %v322, 1.0
      %v339 = vmax.f32 %v323, 1.0
      %v340 = vmax.f32 %v324, 1.0
      %v341 = vmax.f32 %v325, 1.0
      %v342 = vmax.f32 %v326, 1.0
      %v343 = vmax.f32 %v327, 1.0
      %v344 = vmax.f32 %v328, 1.0
      %v345 = vmax.f32 %v329, 1.0
      %v346 = vmax.f32 %v330, 1.0
      %v347 = vmax.f32 %v331, 1.0
      %v348 = vmax.f32 %v332, 1.0
      %v349 = vmax.f32 %v333, 1.0
      %v350 = vmax.f32 %v334, 1.0
      %352 = vset.pattern.permute.xlu0 0
      %353 = vperm.xlu0 %352, %v335
      %v354 = vpop.permute.xlu0 %353
      %357 = vset.pattern.permute.xlu0 0
      %358 = vperm.xlu0 %357, %v336
      %v359 = vpop.permute.xlu0 %358
      %362 = vset.pattern.permute.xlu0 0
      %363 = vperm.xlu0 %362, %v337
      %v364 = vpop.permute.xlu0 %363
      %367 = vset.pattern.permute.xlu0 0
      %368 = vperm.xlu0 %367, %v338
      %v369 = vpop.permute.xlu0 %368
      %372 = vset.pattern.permute.xlu0 0
      %373 = vperm.xlu0 %372, %v339
      %v374 = vpop.permute.xlu0 %373
      %377 = vset.pattern.permute.xlu0 0
      %378 = vperm.xlu0 %377, %v340
      %v379 = vpop.permute.xlu0 %378
      %382 = vset.pattern.permute.xlu0 0
      %383 = vperm.xlu0 %382, %v341
      %v384 = vpop.permute.xlu0 %383
      %387 = vset.pattern.permute.xlu0 0
      %388 = vperm.xlu0 %387, %v342
      %v389 = vpop.permute.xlu0 %388
      %392 = vset.pattern.permute.xlu0 0
      %393 = vperm.xlu0 %392, %v343
      %v394 = vpop.permute.xlu0 %393
      %397 = vset.pattern.permute.xlu0 0
      %398 = vperm.xlu0 %397, %v344
      %v399 = vpop.permute.xlu0 %398
      %402 = vset.pattern.permute.xlu0 0
      %403 = vperm.xlu0 %402, %v345
      %v404 = vpop.permute.xlu0 %403
      %407 = vset.pattern.permute.xlu0 0
      %408 = vperm.xlu0 %407, %v346
      %v409 = vpop.permute.xlu0 %408
      %412 = vset.pattern.permute.xlu0 0
      %413 = vperm.xlu0 %412, %v347
      %v414 = vpop.permute.xlu0 %413
      %417 = vset.pattern.permute.xlu0 0
      %418 = vperm.xlu0 %417, %v348
      %v419 = vpop.permute.xlu0 %418
      %422 = vset.pattern.permute.xlu0 0
      %423 = vperm.xlu0 %422, %v349
      %v424 = vpop.permute.xlu0 %423
      %427 = vset.pattern.permute.xlu0 0
      %428 = vperm.xlu0 %427, %v350
      %v429 = vpop.permute.xlu0 %428
      %v431 = vrcp.pop %v354
      %v432 = vmul.f32 %v354, %v431
      %v433 = vsub.f32 1.0, %v432
      %v434 = vmul.f32 %v431, %v433
      %v435 = vadd.f32 %v431, %v434
      %vm436 = vweird.f32 %v354
      %vm437 = vweird.f32 %v431
      %vm438 = vmor %vm436, %vm437
      %v439 = vsel %vm438, %v431, %v435
      %v440 = vand.u32 2147483647, %v354
      %vm441 = vcmp.eq.f32.partialorder %v440, 8.507059e+37
      %v442 = vand.u32 %v354, 2147483648
      %v443 = vor.u32 1.1754944e-38, %v442
      %v444 = vsel %vm441, %v443, %v439
      %v445 = vmul.f32 %v303, %v444
      %v446 = vrcp.pop %v359
      %v447 = vmul.f32 %v359, %v446
      %v448 = vsub.f32 1.0, %v447
      %v449 = vmul.f32 %v446, %v448
      %v450 = vadd.f32 %v446, %v449
      %vm451 = vweird.f32 %v359
      %vm452 = vweird.f32 %v446
      %vm453 = vmor %vm451, %vm452
      %v454 = vsel %vm453, %v446, %v450
      %v455 = vand.u32 2147483647, %v359
      %vm456 = vcmp.eq.f32.partialorder %v455, 8.507059e+37
      %v457 = vand.u32 %v359, 2147483648
      %v458 = vor.u32 1.1754944e-38, %v457
      %v459 = vsel %vm456, %v458, %v454
      %v460 = vmul.f32 %v304, %v459
      %v461 = vrcp.pop %v364
      %v462 = vmul.f32 %v364, %v461
      %v463 = vsub.f32 1.0, %v462
      %v464 = vmul.f32 %v461, %v463
      %v465 = vadd.f32 %v461, %v464
      %vm466 = vweird.f32 %v364
      %vm467 = vweird.f32 %v461
      %vm468 = vmor %vm466, %vm467
      %v469 = vsel %vm468, %v461, %v465
      %v470 = vand.u32 2147483647, %v364
      %vm471 = vcmp.eq.f32.partialorder %v470, 8.507059e+37
      %v472 = vand.u32 %v364, 2147483648
      %v473 = vor.u32 1.1754944e-38, %v472
      %v474 = vsel %vm471, %v473, %v469
      %v475 = vmul.f32 %v305, %v474
      %v476 = vrcp.pop %v369
      %v477 = vmul.f32 %v369, %v476
      %v478 = vsub.f32 1.0, %v477
      %v479 = vmul.f32 %v476, %v478
      %v480 = vadd.f32 %v476, %v479
      %vm481 = vweird.f32 %v369
      %vm482 = vweird.f32 %v476
      %vm483 = vmor %vm481, %vm482
      %v484 = vsel %vm483, %v476, %v480
      %v485 = vand.u32 2147483647, %v369
      %vm486 = vcmp.eq.f32.partialorder %v485, 8.507059e+37
      %v487 = vand.u32 %v369, 2147483648
      %v488 = vor.u32 1.1754944e-38, %v487
      %v489 = vsel %vm486, %v488, %v484
      %v490 = vmul.f32 %v306, %v489
      %v491 = vrcp.pop %v374
      %v492 = vmul.f32 %v374, %v491
      %v493 = vsub.f32 1.0, %v492
      %v494 = vmul.f32 %v491, %v493
      %v495 = vadd.f32 %v491, %v494
      %vm496 = vweird.f32 %v374
      %vm497 = vweird.f32 %v491
      %vm498 = vmor %vm496, %vm497
      %v499 = vsel %vm498, %v491, %v495
      %v500 = vand.u32 2147483647, %v374
      %vm501 = vcmp.eq.f32.partialorder %v500, 8.507059e+37
      %v502 = vand.u32 %v374, 2147483648
      %v503 = vor.u32 1.1754944e-38, %v502
      %v504 = vsel %vm501, %v503, %v499
      %v505 = vmul.f32 %v307, %v504
      %v506 = vrcp.pop %v379
      %v507 = vmul.f32 %v379, %v506
      %v508 = vsub.f32 1.0, %v507
      %v509 = vmul.f32 %v506, %v508
      %v510 = vadd.f32 %v506, %v509
      %vm511 = vweird.f32 %v379
      %vm512 = vweird.f32 %v506
      %vm513 = vmor %vm511, %vm512
      %v514 = vsel %vm513, %v506, %v510
      %v515 = vand.u32 2147483647, %v379
      %vm516 = vcmp.eq.f32.partialorder %v515, 8.507059e+37
      %v517 = vand.u32 %v379, 2147483648
      %v518 = vor.u32 1.1754944e-38, %v517
      %v519 = vsel %vm516, %v518, %v514
      %v520 = vmul.f32 %v308, %v519
      %v521 = vrcp.pop %v384
      %v522 = vmul.f32 %v384, %v521
      %v523 = vsub.f32 1.0, %v522
      %v524 = vmul.f32 %v521, %v523
      %v525 = vadd.f32 %v521, %v524
      %vm526 = vweird.f32 %v384
      %vm527 = vweird.f32 %v521
      %vm528 = vmor %vm526, %vm527
      %v529 = vsel %vm528, %v521, %v525
      %v530 = vand.u32 2147483647, %v384
      %vm531 = vcmp.eq.f32.partialorder %v530, 8.507059e+37
      %v532 = vand.u32 %v384, 2147483648
      %v533 = vor.u32 1.1754944e-38, %v532
      %v534 = vsel %vm531, %v533, %v529
      %v535 = vmul.f32 %v309, %v534
      %v536 = vrcp.pop %v389
      %v537 = vmul.f32 %v389, %v536
      %v538 = vsub.f32 1.0, %v537
      %v539 = vmul.f32 %v536, %v538
      %v540 = vadd.f32 %v536, %v539
      %vm541 = vweird.f32 %v389
      %vm542 = vweird.f32 %v536
      %vm543 = vmor %vm541, %vm542
      %v544 = vsel %vm543, %v536, %v540
      %v545 = vand.u32 2147483647, %v389
      %vm546 = vcmp.eq.f32.partialorder %v545, 8.507059e+37
      %v547 = vand.u32 %v389, 2147483648
      %v548 = vor.u32 1.1754944e-38, %v547
      %v549 = vsel %vm546, %v548, %v544
      %v550 = vmul.f32 %v310, %v549
      %v551 = vrcp.pop %v394
      %v552 = vmul.f32 %v394, %v551
      %v553 = vsub.f32 1.0, %v552
      %v554 = vmul.f32 %v551, %v553
      %v555 = vadd.f32 %v551, %v554
      %vm556 = vweird.f32 %v394
      %vm557 = vweird.f32 %v551
      %vm558 = vmor %vm556, %vm557
      %v559 = vsel %vm558, %v551, %v555
      %v560 = vand.u32 2147483647, %v394
      %vm561 = vcmp.eq.f32.partialorder %v560, 8.507059e+37
      %v562 = vand.u32 %v394, 2147483648
      %v563 = vor.u32 1.1754944e-38, %v562
      %v564 = vsel %vm561, %v563, %v559
      %v565 = vmul.f32 %v311, %v564
      %v566 = vrcp.pop %v399
      %v567 = vmul.f32 %v399, %v566
      %v568 = vsub.f32 1.0, %v567
      %v569 = vmul.f32 %v566, %v568
      %v570 = vadd.f32 %v566, %v569
      %vm571 = vweird.f32 %v399
      %vm572 = vweird.f32 %v566
      %vm573 = vmor %vm571, %vm572
      %v574 = vsel %vm573, %v566, %v570
      %v575 = vand.u32 2147483647, %v399
      %vm576 = vcmp.eq.f32.partialorder %v575, 8.507059e+37
      %v577 = vand.u32 %v399, 2147483648
      %v578 = vor.u32 1.1754944e-38, %v577
      %v579 = vsel %vm576, %v578, %v574
      %v580 = vmul.f32 %v312, %v579
      %v581 = vrcp.pop %v404
      %v582 = vmul.f32 %v404, %v581
      %v583 = vsub.f32 1.0, %v582
      %v584 = vmul.f32 %v581, %v583
      %v585 = vadd.f32 %v581, %v584
      %vm586 = vweird.f32 %v404
      %vm587 = vweird.f32 %v581
      %vm588 = vmor %vm586, %vm587
      %v589 = vsel %vm588, %v581, %v585
      %v590 = vand.u32 2147483647, %v404
      %vm591 = vcmp.eq.f32.partialorder %v590, 8.507059e+37
      %v592 = vand.u32 %v404, 2147483648
      %v593 = vor.u32 1.1754944e-38, %v592
      %v594 = vsel %vm591, %v593, %v589
      %v595 = vmul.f32 %v313, %v594
      %v596 = vrcp.pop %v409
      %v597 = vmul.f32 %v409, %v596
      %v598 = vsub.f32 1.0, %v597
      %v599 = vmul.f32 %v596, %v598
      %v600 = vadd.f32 %v596, %v599
      %vm601 = vweird.f32 %v409
      %vm602 = vweird.f32 %v596
      %vm603 = vmor %vm601, %vm602
      %v604 = vsel %vm603, %v596, %v600
      %v605 = vand.u32 2147483647, %v409
      %vm606 = vcmp.eq.f32.partialorder %v605, 8.507059e+37
      %v607 = vand.u32 %v409, 2147483648
      %v608 = vor.u32 1.1754944e-38, %v607
      %v609 = vsel %vm606, %v608, %v604
      %v610 = vmul.f32 %v314, %v609
      %v611 = vrcp.pop %v414
      %v612 = vmul.f32 %v414, %v611
      %v613 = vsub.f32 1.0, %v612
      %v614 = vmul.f32 %v611, %v613
      %v615 = vadd.f32 %v611, %v614
      %vm616 = vweird.f32 %v414
      %vm617 = vweird.f32 %v611
      %vm618 = vmor %vm616, %vm617
      %v619 = vsel %vm618, %v611, %v615
      %v620 = vand.u32 2147483647, %v414
      %vm621 = vcmp.eq.f32.partialorder %v620, 8.507059e+37
      %v622 = vand.u32 %v414, 2147483648
      %v623 = vor.u32 1.1754944e-38, %v622
      %v624 = vsel %vm621, %v623, %v619
      %v625 = vmul.f32 %v315, %v624
      %v626 = vrcp.pop %v419
      %v627 = vmul.f32 %v419, %v626
      %v628 = vsub.f32 1.0, %v627
      %v629 = vmul.f32 %v626, %v628
      %v630 = vadd.f32 %v626, %v629
      %vm631 = vweird.f32 %v419
      %vm632 = vweird.f32 %v626
      %vm633 = vmor %vm631, %vm632
      %v634 = vsel %vm633, %v626, %v630
      %v635 = vand.u32 2147483647, %v419
      %vm636 = vcmp.eq.f32.partialorder %v635, 8.507059e+37
      %v637 = vand.u32 %v419, 2147483648
      %v638 = vor.u32 1.1754944e-38, %v637
      %v639 = vsel %vm636, %v638, %v634
      %v640 = vmul.f32 %v316, %v639
      %v641 = vrcp.pop %v424
      %v642 = vmul.f32 %v424, %v641
      %v643 = vsub.f32 1.0, %v642
      %v644 = vmul.f32 %v641, %v643
      %v645 = vadd.f32 %v641, %v644
      %vm646 = vweird.f32 %v424
      %vm647 = vweird.f32 %v641
      %vm648 = vmor %vm646, %vm647
      %v649 = vsel %vm648, %v641, %v645
      %v650 = vand.u32 2147483647, %v424
      %vm651 = vcmp.eq.f32.partialorder %v650, 8.507059e+37
      %v652 = vand.u32 %v424, 2147483648
      %v653 = vor.u32 1.1754944e-38, %v652
      %v654 = vsel %vm651, %v653, %v649
      %v655 = vmul.f32 %v317, %v654
      %v656 = vrcp.pop %v429
      %v657 = vmul.f32 %v429, %v656
      %v658 = vsub.f32 1.0, %v657
      %v659 = vmul.f32 %v656, %v658
      %v660 = vadd.f32 %v656, %v659
      %vm661 = vweird.f32 %v429
      %vm662 = vweird.f32 %v656
      %vm663 = vmor %vm661, %vm662
      %v664 = vsel %vm663, %v656, %v660
      %v665 = vand.u32 2147483647, %v429
      %vm666 = vcmp.eq.f32.partialorder %v665, 8.507059e+37
      %v667 = vand.u32 %v429, 2147483648
      %v668 = vor.u32 1.1754944e-38, %v667
      %v669 = vsel %vm666, %v668, %v664
      %v670 = vmul.f32 %v318, %v669
      %v671 = vsub.f32 %v287, %v445
      %v672 = vsub.f32 %v288, %v460
      %v673 = vsub.f32 %v289, %v475
      %v674 = vsub.f32 %v290, %v490
      %v675 = vsub.f32 %v291, %v505
      %v676 = vsub.f32 %v292, %v520
      %v677 = vsub.f32 %v293, %v535
      %v678 = vsub.f32 %v294, %v550
      %v679 = vsub.f32 %v295, %v565
      %v680 = vsub.f32 %v296, %v580
      %v681 = vsub.f32 %v297, %v595
      %v682 = vsub.f32 %v298, %v610
      %v683 = vsub.f32 %v299, %v625
      %v684 = vsub.f32 %v300, %v640
      %v685 = vsub.f32 %v301, %v655
      %v686 = vsub.f32 %v302, %v670
      %v687 = vmul.f32 %v671, %v671
      %v688 = vmul.f32 %v672, %v672
      %v689 = vmul.f32 %v673, %v673
      %v690 = vmul.f32 %v674, %v674
      %v691 = vmul.f32 %v675, %v675
      %v692 = vmul.f32 %v676, %v676
      %v693 = vmul.f32 %v677, %v677
      %v694 = vmul.f32 %v678, %v678
      %v695 = vmul.f32 %v679, %v679
      %v696 = vmul.f32 %v680, %v680
      %v697 = vmul.f32 %v681, %v681
      %v698 = vmul.f32 %v682, %v682
      %v699 = vmul.f32 %v683, %v683
      %v700 = vmul.f32 %v684, %v684
      %v701 = vmul.f32 %v685, %v685
      %v702 = vmul.f32 %v686, %v686
      %703 = vadd.xlane.f32.xlu0 %v687
      %v704 = vpop.xlane.xlu0 %703
      %705 = vadd.xlane.f32.xlu0 %v688
      %v706 = vpop.xlane.xlu0 %705
      %707 = vadd.xlane.f32.xlu0 %v689
      %v708 = vpop.xlane.xlu0 %707
      %709 = vadd.xlane.f32.xlu0 %v690
      %v710 = vpop.xlane.xlu0 %709
      %711 = vadd.xlane.f32.xlu0 %v691
      %v712 = vpop.xlane.xlu0 %711
      %713 = vadd.xlane.f32.xlu0 %v692
      %v714 = vpop.xlane.xlu0 %713
      %715 = vadd.xlane.f32.xlu0 %v693
      %v716 = vpop.xlane.xlu0 %715
      %717 = vadd.xlane.f32.xlu0 %v694
      %v718 = vpop.xlane.xlu0 %717
      %719 = vadd.xlane.f32.xlu0 %v695
      %v720 = vpop.xlane.xlu0 %719
      %721 = vadd.xlane.f32.xlu0 %v696
      %v722 = vpop.xlane.xlu0 %721
      %723 = vadd.xlane.f32.xlu0 %v697
      %v724 = vpop.xlane.xlu0 %723
      %725 = vadd.xlane.f32.xlu0 %v698
      %v726 = vpop.xlane.xlu0 %725
      %727 = vadd.xlane.f32.xlu0 %v699
      %v728 = vpop.xlane.xlu0 %727
      %729 = vadd.xlane.f32.xlu0 %v700
      %v730 = vpop.xlane.xlu0 %729
      %731 = vadd.xlane.f32.xlu0 %v701
      %v732 = vpop.xlane.xlu0 %731
      %733 = vadd.xlane.f32.xlu0 %v702
      %v734 = vpop.xlane.xlu0 %733
      %v735 = vrsqrt.pop %v704
      %v736 = vmul.f32 %v735, %v704
      %v737 = vmul.f32 %v736, %v735
      %v738 = vmul.f32 0.5, %v737
      %v739 = vsub.f32 1.5, %v738
      %v740 = vmul.f32 %v735, %v739
      %v741 = vmul.f32 %v704, %v740
      %vm742 = vcmp.eq.f32.partialorder %v704, inf
      %v743 = vsel %vm742, %v704, %v741
      %vm744 = vcmp.eq.f32.partialorder %v704, 0.0
      %v745 = vand.u32 %v704, 2147483648
      %v746 = vsel %vm744, %v745, %v743
      %v747 = vrsqrt.pop %v706
      %v748 = vmul.f32 %v747, %v706
      %v749 = vmul.f32 %v748, %v747
      %v750 = vmul.f32 0.5, %v749
      %v751 = vsub.f32 1.5, %v750
      %v752 = vmul.f32 %v747, %v751
      %v753 = vmul.f32 %v706, %v752
      %vm754 = vcmp.eq.f32.partialorder %v706, inf
      %v755 = vsel %vm754, %v706, %v753
      %vm756 = vcmp.eq.f32.partialorder %v706, 0.0
      %v757 = vand.u32 %v706, 2147483648
      %v758 = vsel %vm756, %v757, %v755
      %v759 = vrsqrt.pop %v708
      %v760 = vmul.f32 %v759, %v708
      %v761 = vmul.f32 %v760, %v759
      %v762 = vmul.f32 0.5, %v761
      %v763 = vsub.f32 1.5, %v762
      %v764 = vmul.f32 %v759, %v763
      %v765 = vmul.f32 %v708, %v764
      %vm766 = vcmp.eq.f32.partialorder %v708, inf
      %v767 = vsel %vm766, %v708, %v765
      %vm768 = vcmp.eq.f32.partialorder %v708, 0.0
      %v769 = vand.u32 %v708, 2147483648
      %v770 = vsel %vm768, %v769, %v767
      %v771 = vrsqrt.pop %v710
      %v772 = vmul.f32 %v771, %v710
      %v773 = vmul.f32 %v772, %v771
      %v774 = vmul.f32 0.5, %v773
      %v775 = vsub.f32 1.5, %v774
      %v776 = vmul.f32 %v771, %v775
      %v777 = vmul.f32 %v710, %v776
      %vm778 = vcmp.eq.f32.partialorder %v710, inf
      %v779 = vsel %vm778, %v710, %v777
      %vm780 = vcmp.eq.f32.partialorder %v710, 0.0
      %v781 = vand.u32 %v710, 2147483648
      %v782 = vsel %vm780, %v781, %v779
      %v783 = vrsqrt.pop %v712
      %v784 = vmul.f32 %v783, %v712
      %v785 = vmul.f32 %v784, %v783
      %v786 = vmul.f32 0.5, %v785
      %v787 = vsub.f32 1.5, %v786
      %v788 = vmul.f32 %v783, %v787
      %v789 = vmul.f32 %v712, %v788
      %vm790 = vcmp.eq.f32.partialorder %v712, inf
      %v791 = vsel %vm790, %v712, %v789
      %vm792 = vcmp.eq.f32.partialorder %v712, 0.0
      %v793 = vand.u32 %v712, 2147483648
      %v794 = vsel %vm792, %v793, %v791
      %v795 = vrsqrt.pop %v714
      %v796 = vmul.f32 %v795, %v714
      %v797 = vmul.f32 %v796, %v795
      %v798 = vmul.f32 0.5, %v797
      %v799 = vsub.f32 1.5, %v798
      %v800 = vmul.f32 %v795, %v799
      %v801 = vmul.f32 %v714, %v800
      %vm802 = vcmp.eq.f32.partialorder %v714, inf
      %v803 = vsel %vm802, %v714, %v801
      %vm804 = vcmp.eq.f32.partialorder %v714, 0.0
      %v805 = vand.u32 %v714, 2147483648
      %v806 = vsel %vm804, %v805, %v803
      %v807 = vrsqrt.pop %v716
      %v808 = vmul.f32 %v807, %v716
      %v809 = vmul.f32 %v808, %v807
      %v810 = vmul.f32 0.5, %v809
      %v811 = vsub.f32 1.5, %v810
      %v812 = vmul.f32 %v807, %v811
      %v813 = vmul.f32 %v716, %v812
      %vm814 = vcmp.eq.f32.partialorder %v716, inf
      %v815 = vsel %vm814, %v716, %v813
      %vm816 = vcmp.eq.f32.partialorder %v716, 0.0
      %v817 = vand.u32 %v716, 2147483648
      %v818 = vsel %vm816, %v817, %v815
      %v819 = vrsqrt.pop %v718
      %v820 = vmul.f32 %v819, %v718
      %v821 = vmul.f32 %v820, %v819
      %v822 = vmul.f32 0.5, %v821
      %v823 = vsub.f32 1.5, %v822
      %v824 = vmul.f32 %v819, %v823
      %v825 = vmul.f32 %v718, %v824
      %vm826 = vcmp.eq.f32.partialorder %v718, inf
      %v827 = vsel %vm826, %v718, %v825
      %vm828 = vcmp.eq.f32.partialorder %v718, 0.0
      %v829 = vand.u32 %v718, 2147483648
      %v830 = vsel %vm828, %v829, %v827
      %v831 = vrsqrt.pop %v720
      %v832 = vmul.f32 %v831, %v720
      %v833 = vmul.f32 %v832, %v831
      %v834 = vmul.f32 0.5, %v833
      %v835 = vsub.f32 1.5, %v834
      %v836 = vmul.f32 %v831, %v835
      %v837 = vmul.f32 %v720, %v836
      %vm838 = vcmp.eq.f32.partialorder %v720, inf
      %v839 = vsel %vm838, %v720, %v837
      %vm840 = vcmp.eq.f32.partialorder %v720, 0.0
      %v841 = vand.u32 %v720, 2147483648
      %v842 = vsel %vm840, %v841, %v839
      %v843 = vrsqrt.pop %v722
      %v844 = vmul.f32 %v843, %v722
      %v845 = vmul.f32 %v844, %v843
      %v846 = vmul.f32 0.5, %v845
      %v847 = vsub.f32 1.5, %v846
      %v848 = vmul.f32 %v843, %v847
      %v849 = vmul.f32 %v722, %v848
      %vm850 = vcmp.eq.f32.partialorder %v722, inf
      %v851 = vsel %vm850, %v722, %v849
      %vm852 = vcmp.eq.f32.partialorder %v722, 0.0
      %v853 = vand.u32 %v722, 2147483648
      %v854 = vsel %vm852, %v853, %v851
      %v855 = vrsqrt.pop %v724
      %v856 = vmul.f32 %v855, %v724
      %v857 = vmul.f32 %v856, %v855
      %v858 = vmul.f32 0.5, %v857
      %v859 = vsub.f32 1.5, %v858
      %v860 = vmul.f32 %v855, %v859
      %v861 = vmul.f32 %v724, %v860
      %vm862 = vcmp.eq.f32.partialorder %v724, inf
      %v863 = vsel %vm862, %v724, %v861
      %vm864 = vcmp.eq.f32.partialorder %v724, 0.0
      %v865 = vand.u32 %v724, 2147483648
      %v866 = vsel %vm864, %v865, %v863
      %v867 = vrsqrt.pop %v726
      %v868 = vmul.f32 %v867, %v726
      %v869 = vmul.f32 %v868, %v867
      %v870 = vmul.f32 0.5, %v869
      %v871 = vsub.f32 1.5, %v870
      %v872 = vmul.f32 %v867, %v871
      %v873 = vmul.f32 %v726, %v872
      %vm874 = vcmp.eq.f32.partialorder %v726, inf
      %v875 = vsel %vm874, %v726, %v873
      %vm876 = vcmp.eq.f32.partialorder %v726, 0.0
      %v877 = vand.u32 %v726, 2147483648
      %v878 = vsel %vm876, %v877, %v875
      %v879 = vrsqrt.pop %v728
      %v880 = vmul.f32 %v879, %v728
      %v881 = vmul.f32 %v880, %v879
      %v882 = vmul.f32 0.5, %v881
      %v883 = vsub.f32 1.5, %v882
      %v884 = vmul.f32 %v879, %v883
      %v885 = vmul.f32 %v728, %v884
      %vm886 = vcmp.eq.f32.partialorder %v728, inf
      %v887 = vsel %vm886, %v728, %v885
      %vm888 = vcmp.eq.f32.partialorder %v728, 0.0
      %v889 = vand.u32 %v728, 2147483648
      %v890 = vsel %vm888, %v889, %v887
      %v891 = vrsqrt.pop %v730
      %v892 = vmul.f32 %v891, %v730
      %v893 = vmul.f32 %v892, %v891
      %v894 = vmul.f32 0.5, %v893
      %v895 = vsub.f32 1.5, %v894
      %v896 = vmul.f32 %v891, %v895
      %v897 = vmul.f32 %v730, %v896
      %vm898 = vcmp.eq.f32.partialorder %v730, inf
      %v899 = vsel %vm898, %v730, %v897
      %vm900 = vcmp.eq.f32.partialorder %v730, 0.0
      %v901 = vand.u32 %v730, 2147483648
      %v902 = vsel %vm900, %v901, %v899
      %v903 = vrsqrt.pop %v732
      %v904 = vmul.f32 %v903, %v732
      %v905 = vmul.f32 %v904, %v903
      %v906 = vmul.f32 0.5, %v905
      %v907 = vsub.f32 1.5, %v906
      %v908 = vmul.f32 %v903, %v907
      %v909 = vmul.f32 %v732, %v908
      %vm910 = vcmp.eq.f32.partialorder %v732, inf
      %v911 = vsel %vm910, %v732, %v909
      %vm912 = vcmp.eq.f32.partialorder %v732, 0.0
      %v913 = vand.u32 %v732, 2147483648
      %v914 = vsel %vm912, %v913, %v911
      %v915 = vrsqrt.pop %v734
      %v916 = vmul.f32 %v915, %v734
      %v917 = vmul.f32 %v916, %v915
      %v918 = vmul.f32 0.5, %v917
      %v919 = vsub.f32 1.5, %v918
      %v920 = vmul.f32 %v915, %v919
      %v921 = vmul.f32 %v734, %v920
      %vm922 = vcmp.eq.f32.partialorder %v734, inf
      %v923 = vsel %vm922, %v734, %v921
      %vm924 = vcmp.eq.f32.partialorder %v734, 0.0
      %v925 = vand.u32 %v734, 2147483648
      %v926 = vsel %vm924, %v925, %v923
      %v927 = vtanh.pop %v746
      %v928 = vtanh.pop %v758
      %v929 = vtanh.pop %v770
      %v930 = vtanh.pop %v782
      %v931 = vtanh.pop %v794
      %v932 = vtanh.pop %v806
      %v933 = vtanh.pop %v818
      %v934 = vtanh.pop %v830
      %v935 = vtanh.pop %v842
      %v936 = vtanh.pop %v854
      %v937 = vtanh.pop %v866
      %v938 = vtanh.pop %v878
      %v939 = vtanh.pop %v890
      %v940 = vtanh.pop %v902
      %v941 = vtanh.pop %v914
      %v942 = vtanh.pop %v926
      %v943 = vld [vmem:[#allocation7] sm:$0xff]
      %v944 = vld [vmem:[#allocation7 + $0x8] sm:$0xff]
      %v945 = vld [vmem:[#allocation7 + $0x10] sm:$0xff]
      %v946 = vld [vmem:[#allocation7 + $0x18] sm:$0xff]
      %v947 = vld [vmem:[#allocation7 + $0x20] sm:$0xff]
      %v948 = vld [vmem:[#allocation7 + $0x28] sm:$0xff]
      %v949 = vld [vmem:[#allocation7 + $0x30] sm:$0xff]
      %v950 = vld [vmem:[#allocation7 + $0x38] sm:$0xff]
      %v951 = vld [vmem:[#allocation7 + $0x40] sm:$0xff]
      %v952 = vld [vmem:[#allocation7 + $0x48] sm:$0xff]
      %v953 = vld [vmem:[#allocation7 + $0x50] sm:$0xff]
      %v954 = vld [vmem:[#allocation7 + $0x58] sm:$0xff]
      %v955 = vld [vmem:[#allocation7 + $0x60] sm:$0xff]
      %v956 = vld [vmem:[#allocation7 + $0x68] sm:$0xff]
      %v957 = vld [vmem:[#allocation7 + $0x70] sm:$0xff]
      %v958 = vld [vmem:[#allocation7 + $0x78] sm:$0xff]
      %v959 = vld [vmem:[%s5] sm:$0x1]
      %v961 = vperm.slane %v959, 0
      %963 = vmatpush.msra.mxu0 %v958
      %964 = vmatpush.msra.mxu0 %v957
      %965 = vmatpush.msra.mxu0 %v956
      %966 = vmatpush.msra.mxu0 %v955
      %967 = vmatpush.msra.mxu0 %v954
      %968 = vmatpush.msra.mxu0 %v953
      %969 = vmatpush.msra.mxu0 %v952
      %970 = vmatpush.msra.mxu0 %v951
      %971 = vmatpush.msra.mxu0 %v950
      %972 = vmatpush.msra.mxu0 %v949
      %973 = vmatpush.msra.mxu0 %v948
      %974 = vmatpush.msra.mxu0 %v947
      %975 = vmatpush.msra.mxu0 %v946
      %976 = vmatpush.msra.mxu0 %v945
      %977 = vmatpush.msra.mxu0 %v944
      %978 = vmatpush.msra.mxu0 %v943
      %979 = vmatmul.f32.gmra.mxu0 %v287
      %v980 = vpop.f32.mrf.mxu0
      %v981 = vadd.f32 %v961, %v980
      %982 = vmatmul.f32.gmra.mxu0 %v288
      %v983 = vpop.f32.mrf.mxu0
      %v984 = vadd.f32 %v961, %v983
      %985 = vmatmul.f32.gmra.mxu0 %v289
      %v986 = vpop.f32.mrf.mxu0
      %v987 = vadd.f32 %v961, %v986
      %988 = vmatmul.f32.gmra.mxu0 %v290
      %v989 = vpop.f32.mrf.mxu0
      %v990 = vadd.f32 %v961, %v989
      %991 = vmatmul.f32.gmra.mxu0 %v291
      %v992 = vpop.f32.mrf.mxu0
      %v993 = vadd.f32 %v961, %v992
      %994 = vmatmul.f32.gmra.mxu0 %v292
      %v995 = vpop.f32.mrf.mxu0
      %v996 = vadd.f32 %v961, %v995
      %997 = vmatmul.f32.gmra.mxu0 %v293
      %v998 = vpop.f32.mrf.mxu0
      %v999 = vadd.f32 %v961, %v998
      %1000 = vmatmul.f32.gmra.mxu0 %v294
      %v1001 = vpop.f32.mrf.mxu0
      %v1002 = vadd.f32 %v961, %v1001
      %1003 = vmatmul.f32.gmra.mxu0 %v295
      %v1004 = vpop.f32.mrf.mxu0
      %v1005 = vadd.f32 %v961, %v1004
      %1006 = vmatmul.f32.gmra.mxu0 %v296
      %v1007 = vpop.f32.mrf.mxu0
      %v1008 = vadd.f32 %v961, %v1007
      %1009 = vmatmul.f32.gmra.mxu0 %v297
      %v1010 = vpop.f32.mrf.mxu0
      %v1011 = vadd.f32 %v961, %v1010
      %1012 = vmatmul.f32.gmra.mxu0 %v298
      %v1013 = vpop.f32.mrf.mxu0
      %v1014 = vadd.f32 %v961, %v1013
      %1015 = vmatmul.f32.gmra.mxu0 %v299
      %v1016 = vpop.f32.mrf.mxu0
      %v1017 = vadd.f32 %v961, %v1016
      %1018 = vmatmul.f32.gmra.mxu0 %v300
      %v1019 = vpop.f32.mrf.mxu0
      %v1020 = vadd.f32 %v961, %v1019
      %1021 = vmatmul.f32.gmra.mxu0 %v301
      %v1022 = vpop.f32.mrf.mxu0
      %v1023 = vadd.f32 %v961, %v1022
      %1024 = vmatmul.f32.gmra.mxu0 %v302
      %v1025 = vpop.f32.mrf.mxu0
      %v1026 = vadd.f32 %v961, %v1025
      %1027 = vdwg.mxu0
      %v1028 = vmax.f32 %v981, 0.0
      %v1029 = vmax.f32 %v984, 0.0
      %v1030 = vmax.f32 %v987, 0.0
      %v1031 = vmax.f32 %v990, 0.0
      %v1032 = vmax.f32 %v993, 0.0
      %v1033 = vmax.f32 %v996, 0.0
      %v1034 = vmax.f32 %v999, 0.0
      %v1035 = vmax.f32 %v1002, 0.0
      %v1036 = vmax.f32 %v1005, 0.0
      %v1037 = vmax.f32 %v1008, 0.0
      %v1038 = vmax.f32 %v1011, 0.0
      %v1039 = vmax.f32 %v1014, 0.0
      %v1040 = vmax.f32 %v1017, 0.0
      %v1041 = vmax.f32 %v1020, 0.0
      %v1042 = vmax.f32 %v1023, 0.0
      %v1043 = vmax.f32 %v1026, 0.0
      %v1044 = vld [vmem:[#allocation8] sm:$0xff]
      %v1045 = vld [vmem:[#allocation8 + $0x8] sm:$0xff]
      %v1046 = vld [vmem:[#allocation8 + $0x10] sm:$0xff]
      %v1047 = vld [vmem:[#allocation8 + $0x18] sm:$0xff]
      %v1048 = vld [vmem:[#allocation8 + $0x20] sm:$0xff]
      %v1049 = vld [vmem:[#allocation8 + $0x28] sm:$0xff]
      %v1050 = vld [vmem:[#allocation8 + $0x30] sm:$0xff]
      %v1051 = vld [vmem:[#allocation8 + $0x38] sm:$0xff]
      %v1052 = vld [vmem:[#allocation8 + $0x40] sm:$0xff]
      %v1053 = vld [vmem:[#allocation8 + $0x48] sm:$0xff]
      %v1054 = vld [vmem:[#allocation8 + $0x50] sm:$0xff]
      %v1055 = vld [vmem:[#allocation8 + $0x58] sm:$0xff]
      %v1056 = vld [vmem:[#allocation8 + $0x60] sm:$0xff]
      %v1057 = vld [vmem:[#allocation8 + $0x68] sm:$0xff]
      %v1058 = vld [vmem:[#allocation8 + $0x70] sm:$0xff]
      %v1059 = vld [vmem:[#allocation8 + $0x78] sm:$0xff]
      %v1060 = vld [vmem:[%s7] sm:$0x1]
      %v1062 = vperm.slane %v1060, 0
      %1064 = vmatpush.msra.mxu0 %v1059
      %1065 = vmatpush.msra.mxu0 %v1058
      %1066 = vmatpush.msra.mxu0 %v1057
      %1067 = vmatpush.msra.mxu0 %v1056
      %1068 = vmatpush.msra.mxu0 %v1055
      %1069 = vmatpush.msra.mxu0 %v1054
      %1070 = vmatpush.msra.mxu0 %v1053
      %1071 = vmatpush.msra.mxu0 %v1052
      %1072 = vmatpush.msra.mxu0 %v1051
      %1073 = vmatpush.msra.mxu0 %v1050
      %1074 = vmatpush.msra.mxu0 %v1049
      %1075 = vmatpush.msra.mxu0 %v1048
      %1076 = vmatpush.msra.mxu0 %v1047
      %1077 = vmatpush.msra.mxu0 %v1046
      %1078 = vmatpush.msra.mxu0 %v1045
      %1079 = vmatpush.msra.mxu0 %v1044
      %1080 = vmatmul.f32.gmra.mxu0 %v1028
      %v1081 = vpop.f32.mrf.mxu0
      %v1082 = vadd.f32 %v1062, %v1081
      %1083 = vmatmul.f32.gmra.mxu0 %v1029
      %v1084 = vpop.f32.mrf.mxu0
      %v1085 = vadd.f32 %v1062, %v1084
      %1086 = vmatmul.f32.gmra.mxu0 %v1030
      %v1087 = vpop.f32.mrf.mxu0
      %v1088 = vadd.f32 %v1062, %v1087
      %1089 = vmatmul.f32.gmra.mxu0 %v1031
      %v1090 = vpop.f32.mrf.mxu0
      %v1091 = vadd.f32 %v1062, %v1090
      %1092 = vmatmul.f32.gmra.mxu0 %v1032
      %v1093 = vpop.f32.mrf.mxu0
      %v1094 = vadd.f32 %v1062, %v1093
      %1095 = vmatmul.f32.gmra.mxu0 %v1033
      %v1096 = vpop.f32.mrf.mxu0
      %v1097 = vadd.f32 %v1062, %v1096
      %1098 = vmatmul.f32.gmra.mxu0 %v1034
      %v1099 = vpop.f32.mrf.mxu0
      %v1100 = vadd.f32 %v1062, %v1099
      %1101 = vmatmul.f32.gmra.mxu0 %v1035
      %v1102 = vpop.f32.mrf.mxu0
      %v1103 = vadd.f32 %v1062, %v1102
      %1104 = vmatmul.f32.gmra.mxu0 %v1036
      %v1105 = vpop.f32.mrf.mxu0
      %v1106 = vadd.f32 %v1062, %v1105
      %1107 = vmatmul.f32.gmra.mxu0 %v1037
      %v1108 = vpop.f32.mrf.mxu0
      %v1109 = vadd.f32 %v1062, %v1108
      %1110 = vmatmul.f32.gmra.mxu0 %v1038
      %v1111 = vpop.f32.mrf.mxu0
      %v1112 = vadd.f32 %v1062, %v1111
      %1113 = vmatmul.f32.gmra.mxu0 %v1039
      %v1114 = vpop.f32.mrf.mxu0
      %v1115 = vadd.f32 %v1062, %v1114
      %1116 = vmatmul.f32.gmra.mxu0 %v1040
      %v1117 = vpop.f32.mrf.mxu0
      %v1118 = vadd.f32 %v1062, %v1117
      %1119 = vmatmul.f32.gmra.mxu0 %v1041
      %v1120 = vpop.f32.mrf.mxu0
      %v1121 = vadd.f32 %v1062, %v1120
      %1122 = vmatmul.f32.gmra.mxu0 %v1042
      %v1123 = vpop.f32.mrf.mxu0
      %v1124 = vadd.f32 %v1062, %v1123
      %1125 = vmatmul.f32.gmra.mxu0 %v1043
      %v1126 = vpop.f32.mrf.mxu0
      %v1127 = vadd.f32 %v1062, %v1126
      %1128 = vdwg.mxu0
      %v1129 = vmul.f32 %v1082, 0.2
      %v1130 = vmul.f32 %v1085, 0.2
      %v1131 = vmul.f32 %v1088, 0.2
      %v1132 = vmul.f32 %v1091, 0.2
      %v1133 = vmul.f32 %v1094, 0.2
      %v1134 = vmul.f32 %v1097, 0.2
      %v1135 = vmul.f32 %v1100, 0.2
      %v1136 = vmul.f32 %v1103, 0.2
      %v1137 = vmul.f32 %v1106, 0.2
      %v1138 = vmul.f32 %v1109, 0.2
      %v1139 = vmul.f32 %v1112, 0.2
      %v1140 = vmul.f32 %v1115, 0.2
      %v1141 = vmul.f32 %v1118, 0.2
      %v1142 = vmul.f32 %v1121, 0.2
      %v1143 = vmul.f32 %v1124, 0.2
      %v1144 = vmul.f32 %v1127, 0.2
      %v1145 = vmul.f32 %v1129, %v927
      %v1146 = vmul.f32 %v1130, %v928
      %v1147 = vmul.f32 %v1131, %v929
      %v1148 = vmul.f32 %v1132, %v930
      %v1149 = vmul.f32 %v1133, %v931
      %v1150 = vmul.f32 %v1134, %v932
      %v1151 = vmul.f32 %v1135, %v933
      %v1152 = vmul.f32 %v1136, %v934
      %v1153 = vmul.f32 %v1137, %v935
      %v1154 = vmul.f32 %v1138, %v936
      %v1155 = vmul.f32 %v1139, %v937
      %v1156 = vmul.f32 %v1140, %v938
      %v1157 = vmul.f32 %v1141, %v939
      %v1158 = vmul.f32 %v1142, %v940
      %v1159 = vmul.f32 %v1143, %v941
      %v1160 = vmul.f32 %v1144, %v942
      %v1161 = vadd.f32 %v287, %v1145
      %v1162 = vadd.f32 %v288, %v1146
      %v1163 = vadd.f32 %v289, %v1147
      %v1164 = vadd.f32 %v290, %v1148
      %v1165 = vadd.f32 %v291, %v1149
      %v1166 = vadd.f32 %v292, %v1150
      %v1167 = vadd.f32 %v293, %v1151
      %v1168 = vadd.f32 %v294, %v1152
      %v1169 = vadd.f32 %v295, %v1153
      %v1170 = vadd.f32 %v296, %v1154
      %v1171 = vadd.f32 %v297, %v1155
      %v1172 = vadd.f32 %v298, %v1156
      %v1173 = vadd.f32 %v299, %v1157
      %v1174 = vadd.f32 %v300, %v1158
      %v1175 = vadd.f32 %v301, %v1159
      %v1176 = vadd.f32 %v302, %v1160
      %v1177 = vlaneseq
      %v1178 = vand.u32 %v1177, 127
      %vm1179 = vcmp.lt.s32.totalorder %v1178, 32
      %1180 = vadd.xlane.f32.xlu0 %v1161
      %v1181 = vpop.xlane.xlu0 %1180
      %1182 = vadd.xlane.f32.xlu0 %v1162
      %v1183 = vpop.xlane.xlu0 %1182
      %1184 = vadd.xlane.f32.xlu0 %v1163
      %v1185 = vpop.xlane.xlu0 %1184
      %1186 = vadd.xlane.f32.xlu0 %v1164
      %v1187 = vpop.xlane.xlu0 %1186
      %1188 = vadd.xlane.f32.xlu0 %v1165
      %v1189 = vpop.xlane.xlu0 %1188
      %1190 = vadd.xlane.f32.xlu0 %v1166
      %v1191 = vpop.xlane.xlu0 %1190
      %1192 = vadd.xlane.f32.xlu0 %v1167
      %v1193 = vpop.xlane.xlu0 %1192
      %1194 = vadd.xlane.f32.xlu0 %v1168
      %v1195 = vpop.xlane.xlu0 %1194
      %1196 = vadd.xlane.f32.xlu0 %v1169
      %v1197 = vpop.xlane.xlu0 %1196
      %1198 = vadd.xlane.f32.xlu0 %v1170
      %v1199 = vpop.xlane.xlu0 %1198
      %1200 = vadd.xlane.f32.xlu0 %v1171
      %v1201 = vpop.xlane.xlu0 %1200
      %1202 = vadd.xlane.f32.xlu0 %v1172
      %v1203 = vpop.xlane.xlu0 %1202
      %1204 = vadd.xlane.f32.xlu0 %v1173
      %v1205 = vpop.xlane.xlu0 %1204
      %1206 = vadd.xlane.f32.xlu0 %v1174
      %v1207 = vpop.xlane.xlu0 %1206
      %1208 = vadd.xlane.f32.xlu0 %v1175
      %v1209 = vpop.xlane.xlu0 %1208
      %1210 = vadd.xlane.f32.xlu0 %v1176
      %v1211 = vpop.xlane.xlu0 %1210
      %v1212 = vmul.f32 %v1181, 0.03125
      %v1213 = vmul.f32 %v1183, 0.03125
      %v1214 = vmul.f32 %v1185, 0.03125
      %v1215 = vmul.f32 %v1187, 0.03125
      %v1216 = vmul.f32 %v1189, 0.03125
      %v1217 = vmul.f32 %v1191, 0.03125
      %v1218 = vmul.f32 %v1193, 0.03125
      %v1219 = vmul.f32 %v1195, 0.03125
      %v1220 = vmul.f32 %v1197, 0.03125
      %v1221 = vmul.f32 %v1199, 0.03125
      %v1222 = vmul.f32 %v1201, 0.03125
      %v1223 = vmul.f32 %v1203, 0.03125
      %v1224 = vmul.f32 %v1205, 0.03125
      %v1225 = vmul.f32 %v1207, 0.03125
      %v1226 = vmul.f32 %v1209, 0.03125
      %v1227 = vmul.f32 %v1211, 0.03125
      %v1228 = vsub.f32 %v1161, %v1212
      %v1229 = vsub.f32 %v1162, %v1213
      %v1230 = vsub.f32 %v1163, %v1214
      %v1231 = vsub.f32 %v1164, %v1215
      %v1232 = vsub.f32 %v1165, %v1216
      %v1233 = vsub.f32 %v1166, %v1217
      %v1234 = vsub.f32 %v1167, %v1218
      %v1235 = vsub.f32 %v1168, %v1219
      %v1236 = vsub.f32 %v1169, %v1220
      %v1237 = vsub.f32 %v1170, %v1221
      %v1238 = vsub.f32 %v1171, %v1222
      %v1239 = vsub.f32 %v1172, %v1223
      %v1240 = vsub.f32 %v1173, %v1224
      %v1241 = vsub.f32 %v1174, %v1225
      %v1242 = vsub.f32 %v1175, %v1226
      %v1243 = vsub.f32 %v1176, %v1227
      %v1244 = vsel %vm1179, %v1228, 0.0
      %v1245 = vsel %vm1179, %v1229, 0.0
      %v1246 = vsel %vm1179, %v1230, 0.0
      %v1247 = vsel %vm1179, %v1231, 0.0
      %v1248 = vsel %vm1179, %v1232, 0.0
      %v1249 = vsel %vm1179, %v1233, 0.0
      %v1250 = vsel %vm1179, %v1234, 0.0
      %v1251 = vsel %vm1179, %v1235, 0.0
      %v1252 = vsel %vm1179, %v1236, 0.0
      %v1253 = vsel %vm1179, %v1237, 0.0
      %v1254 = vsel %vm1179, %v1238, 0.0
      %v1255 = vsel %vm1179, %v1239, 0.0
      %v1256 = vsel %vm1179, %v1240, 0.0
      %v1257 = vsel %vm1179, %v1241, 0.0
      %v1258 = vsel %vm1179, %v1242, 0.0
      %v1259 = vsel %vm1179, %v1243, 0.0
      %v1260 = vmul.f32 %v1244, %v1244
      %v1261 = vmul.f32 %v1245, %v1245
      %v1262 = vmul.f32 %v1246, %v1246
      %v1263 = vmul.f32 %v1247, %v1247
      %v1264 = vmul.f32 %v1248, %v1248
      %v1265 = vmul.f32 %v1249, %v1249
      %v1266 = vmul.f32 %v1250, %v1250
      %v1267 = vmul.f32 %v1251, %v1251
      %v1268 = vmul.f32 %v1252, %v1252
      %v1269 = vmul.f32 %v1253, %v1253
      %v1270 = vmul.f32 %v1254, %v1254
      %v1271 = vmul.f32 %v1255, %v1255
      %v1272 = vmul.f32 %v1256, %v1256
      %v1273 = vmul.f32 %v1257, %v1257
      %v1274 = vmul.f32 %v1258, %v1258
      %v1275 = vmul.f32 %v1259, %v1259
      %1276 = vadd.xlane.f32.xlu0 %v1260
      %v1277 = vpop.xlane.xlu0 %1276
      %1278 = vadd.xlane.f32.xlu0 %v1261
      %v1279 = vpop.xlane.xlu0 %1278
      %1280 = vadd.xlane.f32.xlu0 %v1262
      %v1281 = vpop.xlane.xlu0 %1280
      %1282 = vadd.xlane.f32.xlu0 %v1263
      %v1283 = vpop.xlane.xlu0 %1282
      %1284 = vadd.xlane.f32.xlu0 %v1264
      %v1285 = vpop.xlane.xlu0 %1284
      %1286 = vadd.xlane.f32.xlu0 %v1265
      %v1287 = vpop.xlane.xlu0 %1286
      %1288 = vadd.xlane.f32.xlu0 %v1266
      %v1289 = vpop.xlane.xlu0 %1288
      %1290 = vadd.xlane.f32.xlu0 %v1267
      %v1291 = vpop.xlane.xlu0 %1290
      %1292 = vadd.xlane.f32.xlu0 %v1268
      %v1293 = vpop.xlane.xlu0 %1292
      %1294 = vadd.xlane.f32.xlu0 %v1269
      %v1295 = vpop.xlane.xlu0 %1294
      %1296 = vadd.xlane.f32.xlu0 %v1270
      %v1297 = vpop.xlane.xlu0 %1296
      %1298 = vadd.xlane.f32.xlu0 %v1271
      %v1299 = vpop.xlane.xlu0 %1298
      %1300 = vadd.xlane.f32.xlu0 %v1272
      %v1301 = vpop.xlane.xlu0 %1300
      %1302 = vadd.xlane.f32.xlu0 %v1273
      %v1303 = vpop.xlane.xlu0 %1302
      %1304 = vadd.xlane.f32.xlu0 %v1274
      %v1305 = vpop.xlane.xlu0 %1304
      %1306 = vadd.xlane.f32.xlu0 %v1275
      %v1307 = vpop.xlane.xlu0 %1306
      %v1308 = vmul.f32 %v1277, 0.03125
      %v1309 = vmul.f32 %v1279, 0.03125
      %v1310 = vmul.f32 %v1281, 0.03125
      %v1311 = vmul.f32 %v1283, 0.03125
      %v1312 = vmul.f32 %v1285, 0.03125
      %v1313 = vmul.f32 %v1287, 0.03125
      %v1314 = vmul.f32 %v1289, 0.03125
      %v1315 = vmul.f32 %v1291, 0.03125
      %v1316 = vmul.f32 %v1293, 0.03125
      %v1317 = vmul.f32 %v1295, 0.03125
      %v1318 = vmul.f32 %v1297, 0.03125
      %v1319 = vmul.f32 %v1299, 0.03125
      %v1320 = vmul.f32 %v1301, 0.03125
      %v1321 = vmul.f32 %v1303, 0.03125
      %v1322 = vmul.f32 %v1305, 0.03125
      %v1323 = vmul.f32 %v1307, 0.03125
      %v1324 = vadd.f32 %v1308, 1e-05
      %v1325 = vadd.f32 %v1309, 1e-05
      %v1326 = vadd.f32 %v1310, 1e-05
      %v1327 = vadd.f32 %v1311, 1e-05
      %v1328 = vadd.f32 %v1312, 1e-05
      %v1329 = vadd.f32 %v1313, 1e-05
      %v1330 = vadd.f32 %v1314, 1e-05
      %v1331 = vadd.f32 %v1315, 1e-05
      %v1332 = vadd.f32 %v1316, 1e-05
      %v1333 = vadd.f32 %v1317, 1e-05
      %v1334 = vadd.f32 %v1318, 1e-05
      %v1335 = vadd.f32 %v1319, 1e-05
      %v1336 = vadd.f32 %v1320, 1e-05
      %v1337 = vadd.f32 %v1321, 1e-05
      %v1338 = vadd.f32 %v1322, 1e-05
      %v1339 = vadd.f32 %v1323, 1e-05
      %v1340 = vrsqrt.pop %v1324
      %v1341 = vmul.f32 %v1340, %v1324
      %v1342 = vmul.f32 %v1341, %v1340
      %v1343 = vmul.f32 0.5, %v1342
      %v1344 = vsub.f32 1.5, %v1343
      %v1345 = vmul.f32 %v1340, %v1344
      %vm1346 = vweird.f32 %v1324
      %vm1347 = vweird.f32 %v1340
      %vm1348 = vmor %vm1346, %vm1347
      %v1349 = vsel %vm1348, %v1340, %v1345
      %v1350 = vrsqrt.pop %v1325
      %v1351 = vmul.f32 %v1350, %v1325
      %v1352 = vmul.f32 %v1351, %v1350
      %v1353 = vmul.f32 0.5, %v1352
      %v1354 = vsub.f32 1.5, %v1353
      %v1355 = vmul.f32 %v1350, %v1354
      %vm1356 = vweird.f32 %v1325
      %vm1357 = vweird.f32 %v1350
      %vm1358 = vmor %vm1356, %vm1357
      %v1359 = vsel %vm1358, %v1350, %v1355
      %v1360 = vrsqrt.pop %v1326
      %v1361 = vmul.f32 %v1360, %v1326
      %v1362 = vmul.f32 %v1361, %v1360
      %v1363 = vmul.f32 0.5, %v1362
      %v1364 = vsub.f32 1.5, %v1363
      %v1365 = vmul.f32 %v1360, %v1364
      %vm1366 = vweird.f32 %v1326
      %vm1367 = vweird.f32 %v1360
      %vm1368 = vmor %vm1366, %vm1367
      %v1369 = vsel %vm1368, %v1360, %v1365
      %v1370 = vrsqrt.pop %v1327
      %v1371 = vmul.f32 %v1370, %v1327
      %v1372 = vmul.f32 %v1371, %v1370
      %v1373 = vmul.f32 0.5, %v1372
      %v1374 = vsub.f32 1.5, %v1373
      %v1375 = vmul.f32 %v1370, %v1374
      %vm1376 = vweird.f32 %v1327
      %vm1377 = vweird.f32 %v1370
      %vm1378 = vmor %vm1376, %vm1377
      %v1379 = vsel %vm1378, %v1370, %v1375
      %v1380 = vrsqrt.pop %v1328
      %v1381 = vmul.f32 %v1380, %v1328
      %v1382 = vmul.f32 %v1381, %v1380
      %v1383 = vmul.f32 0.5, %v1382
      %v1384 = vsub.f32 1.5, %v1383
      %v1385 = vmul.f32 %v1380, %v1384
      %vm1386 = vweird.f32 %v1328
      %vm1387 = vweird.f32 %v1380
      %vm1388 = vmor %vm1386, %vm1387
      %v1389 = vsel %vm1388, %v1380, %v1385
      %v1390 = vrsqrt.pop %v1329
      %v1391 = vmul.f32 %v1390, %v1329
      %v1392 = vmul.f32 %v1391, %v1390
      %v1393 = vmul.f32 0.5, %v1392
      %v1394 = vsub.f32 1.5, %v1393
      %v1395 = vmul.f32 %v1390, %v1394
      %vm1396 = vweird.f32 %v1329
      %vm1397 = vweird.f32 %v1390
      %vm1398 = vmor %vm1396, %vm1397
      %v1399 = vsel %vm1398, %v1390, %v1395
      %v1400 = vrsqrt.pop %v1330
      %v1401 = vmul.f32 %v1400, %v1330
      %v1402 = vmul.f32 %v1401, %v1400
      %v1403 = vmul.f32 0.5, %v1402
      %v1404 = vsub.f32 1.5, %v1403
      %v1405 = vmul.f32 %v1400, %v1404
      %vm1406 = vweird.f32 %v1330
      %vm1407 = vweird.f32 %v1400
      %vm1408 = vmor %vm1406, %vm1407
      %v1409 = vsel %vm1408, %v1400, %v1405
      %v1410 = vrsqrt.pop %v1331
      %v1411 = vmul.f32 %v1410, %v1331
      %v1412 = vmul.f32 %v1411, %v1410
      %v1413 = vmul.f32 0.5, %v1412
      %v1414 = vsub.f32 1.5, %v1413
      %v1415 = vmul.f32 %v1410, %v1414
      %vm1416 = vweird.f32 %v1331
      %vm1417 = vweird.f32 %v1410
      %vm1418 = vmor %vm1416, %vm1417
      %v1419 = vsel %vm1418, %v1410, %v1415
      %v1420 = vrsqrt.pop %v1332
      %v1421 = vmul.f32 %v1420, %v1332
      %v1422 = vmul.f32 %v1421, %v1420
      %v1423 = vmul.f32 0.5, %v1422
      %v1424 = vsub.f32 1.5, %v1423
      %v1425 = vmul.f32 %v1420, %v1424
      %vm1426 = vweird.f32 %v1332
      %vm1427 = vweird.f32 %v1420
      %vm1428 = vmor %vm1426, %vm1427
      %v1429 = vsel %vm1428, %v1420, %v1425
      %v1430 = vrsqrt.pop %v1333
      %v1431 = vmul.f32 %v1430, %v1333
      %v1432 = vmul.f32 %v1431, %v1430
      %v1433 = vmul.f32 0.5, %v1432
      %v1434 = vsub.f32 1.5, %v1433
      %v1435 = vmul.f32 %v1430, %v1434
      %vm1436 = vweird.f32 %v1333
      %vm1437 = vweird.f32 %v1430
      %vm1438 = vmor %vm1436, %vm1437
      %v1439 = vsel %vm1438, %v1430, %v1435
      %v1440 = vrsqrt.pop %v1334
      %v1441 = vmul.f32 %v1440, %v1334
      %v1442 = vmul.f32 %v1441, %v1440
      %v1443 = vmul.f32 0.5, %v1442
      %v1444 = vsub.f32 1.5, %v1443
      %v1445 = vmul.f32 %v1440, %v1444
      %vm1446 = vweird.f32 %v1334
      %vm1447 = vweird.f32 %v1440
      %vm1448 = vmor %vm1446, %vm1447
      %v1449 = vsel %vm1448, %v1440, %v1445
      %v1450 = vrsqrt.pop %v1335
      %v1451 = vmul.f32 %v1450, %v1335
      %v1452 = vmul.f32 %v1451, %v1450
      %v1453 = vmul.f32 0.5, %v1452
      %v1454 = vsub.f32 1.5, %v1453
      %v1455 = vmul.f32 %v1450, %v1454
      %vm1456 = vweird.f32 %v1335
      %vm1457 = vweird.f32 %v1450
      %vm1458 = vmor %vm1456, %vm1457
      %v1459 = vsel %vm1458, %v1450, %v1455
      %v1460 = vrsqrt.pop %v1336
      %v1461 = vmul.f32 %v1460, %v1336
      %v1462 = vmul.f32 %v1461, %v1460
      %v1463 = vmul.f32 0.5, %v1462
      %v1464 = vsub.f32 1.5, %v1463
      %v1465 = vmul.f32 %v1460, %v1464
      %vm1466 = vweird.f32 %v1336
      %vm1467 = vweird.f32 %v1460
      %vm1468 = vmor %vm1466, %vm1467
      %v1469 = vsel %vm1468, %v1460, %v1465
      %v1470 = vrsqrt.pop %v1337
      %v1471 = vmul.f32 %v1470, %v1337
      %v1472 = vmul.f32 %v1471, %v1470
      %v1473 = vmul.f32 0.5, %v1472
      %v1474 = vsub.f32 1.5, %v1473
      %v1475 = vmul.f32 %v1470, %v1474
      %vm1476 = vweird.f32 %v1337
      %vm1477 = vweird.f32 %v1470
      %vm1478 = vmor %vm1476, %vm1477
      %v1479 = vsel %vm1478, %v1470, %v1475
      %v1480 = vrsqrt.pop %v1338
      %v1481 = vmul.f32 %v1480, %v1338
      %v1482 = vmul.f32 %v1481, %v1480
      %v1483 = vmul.f32 0.5, %v1482
      %v1484 = vsub.f32 1.5, %v1483
      %v1485 = vmul.f32 %v1480, %v1484
      %vm1486 = vweird.f32 %v1338
      %vm1487 = vweird.f32 %v1480
      %vm1488 = vmor %vm1486, %vm1487
      %v1489 = vsel %vm1488, %v1480, %v1485
      %v1490 = vrsqrt.pop %v1339
      %v1491 = vmul.f32 %v1490, %v1339
      %v1492 = vmul.f32 %v1491, %v1490
      %v1493 = vmul.f32 0.5, %v1492
      %v1494 = vsub.f32 1.5, %v1493
      %v1495 = vmul.f32 %v1490, %v1494
      %vm1496 = vweird.f32 %v1339
      %vm1497 = vweird.f32 %v1490
      %vm1498 = vmor %vm1496, %vm1497
      %v1499 = vsel %vm1498, %v1490, %v1495
      %v1500 = vmul.f32 %v1244, %v1349
      %v1501 = vmul.f32 %v1245, %v1359
      %v1502 = vmul.f32 %v1246, %v1369
      %v1503 = vmul.f32 %v1247, %v1379
      %v1504 = vmul.f32 %v1248, %v1389
      %v1505 = vmul.f32 %v1249, %v1399
      %v1506 = vmul.f32 %v1250, %v1409
      %v1507 = vmul.f32 %v1251, %v1419
      %v1508 = vmul.f32 %v1252, %v1429
      %v1509 = vmul.f32 %v1253, %v1439
      %v1510 = vmul.f32 %v1254, %v1449
      %v1511 = vmul.f32 %v1255, %v1459
      %v1512 = vmul.f32 %v1256, %v1469
      %v1513 = vmul.f32 %v1257, %v1479
      %v1514 = vmul.f32 %v1258, %v1489
      %v1515 = vmul.f32 %v1259, %v1499
      %v1516 = vld [vmem:[%s8] sm:$0x1]
      %v1518 = vperm.slane %v1516, 0
      %v1520 = vmul.f32 %v1500, %v1518
      %v1521 = vmul.f32 %v1501, %v1518
      %v1522 = vmul.f32 %v1502, %v1518
      %v1523 = vmul.f32 %v1503, %v1518
      %v1524 = vmul.f32 %v1504, %v1518
      %v1525 = vmul.f32 %v1505, %v1518
      %v1526 = vmul.f32 %v1506, %v1518
      %v1527 = vmul.f32 %v1507, %v1518
      %v1528 = vmul.f32 %v1508, %v1518
      %v1529 = vmul.f32 %v1509, %v1518
      %v1530 = vmul.f32 %v1510, %v1518
      %v1531 = vmul.f32 %v1511, %v1518
      %v1532 = vmul.f32 %v1512, %v1518
      %v1533 = vmul.f32 %v1513, %v1518
      %v1534 = vmul.f32 %v1514, %v1518
      %v1535 = vmul.f32 %v1515, %v1518
      %v1536 = vld [vmem:[%s9] sm:$0x1]
      %v1538 = vperm.slane %v1536, 0
      %v1540 = vadd.f32 %v1520, %v1538
      %v1541 = vadd.f32 %v1521, %v1538
      %v1542 = vadd.f32 %v1522, %v1538
      %v1543 = vadd.f32 %v1523, %v1538
      %v1544 = vadd.f32 %v1524, %v1538
      %v1545 = vadd.f32 %v1525, %v1538
      %v1546 = vadd.f32 %v1526, %v1538
      %v1547 = vadd.f32 %v1527, %v1538
      %v1548 = vadd.f32 %v1528, %v1538
      %v1549 = vadd.f32 %v1529, %v1538
      %v1550 = vadd.f32 %v1530, %v1538
      %v1551 = vadd.f32 %v1531, %v1538
      %v1552 = vadd.f32 %v1532, %v1538
      %v1553 = vadd.f32 %v1533, %v1538
      %v1554 = vadd.f32 %v1534, %v1538
      %v1555 = vadd.f32 %v1535, %v1538
      %1556 = vst [vmem:[#allocation10] sm:$0xff] %v1540
      %1557 = vst [vmem:[#allocation10 + $0x8] sm:$0xff] %v1541
      %1558 = vst [vmem:[#allocation10 + $0x10] sm:$0xff] %v1542
      %1559 = vst [vmem:[#allocation10 + $0x18] sm:$0xff] %v1543
      %1560 = vst [vmem:[#allocation10 + $0x20] sm:$0xff] %v1544
      %1561 = vst [vmem:[#allocation10 + $0x28] sm:$0xff] %v1545
      %1562 = vst [vmem:[#allocation10 + $0x30] sm:$0xff] %v1546
      %1563 = vst [vmem:[#allocation10 + $0x38] sm:$0xff] %v1547
      %1564 = vst [vmem:[#allocation10 + $0x40] sm:$0xff] %v1548
      %1565 = vst [vmem:[#allocation10 + $0x48] sm:$0xff] %v1549
      %1566 = vst [vmem:[#allocation10 + $0x50] sm:$0xff] %v1550
      %1567 = vst [vmem:[#allocation10 + $0x58] sm:$0xff] %v1551
      %1568 = vst [vmem:[#allocation10 + $0x60] sm:$0xff] %v1552
      %1569 = vst [vmem:[#allocation10 + $0x68] sm:$0xff] %v1553
      %1570 = vst [vmem:[#allocation10 + $0x70] sm:$0xff] %v1554
      %1571 = vst [vmem:[#allocation10 + $0x78] sm:$0xff] %v1555
    $region69: #{tpu_custom_call.1} parent=1 // pred_fallthru
      _
    // Predicated region
    $region70: #{tpu_custom_call.1} parent=1 // pred_check
      _
    $region71: #{tpu_custom_call.1} parent=1 // pred_check_branch
      %1573 = sbr.rel (0) target = $region73
    $region72: #{tpu_custom_call.1} parent=1 // pred_region
      %1575 = vsyncadd [#allocation4], 0
      %s1576 = sshll.u32 [#allocation10], 4
      %s1577 = int_to_ptr.vmem [resolvable:$true] %s1576
      %s1578 = sshll.u32 %s10, 4
      %s1579 = int_to_ptr.hbm [resolvable:$true] %s1578
      %1584 = dma.vmem_to_hbm [thread:$0]  %s1577, 2048, %s1579, [#allocation4], 128, 128, 8
    $region73: #{tpu_custom_call.1} parent=1 // pred_fallthru
      _
    // Predicated region
    $region74: #{tpu_custom_call.1} parent=1 // pred_check
      _
    $region75: #{tpu_custom_call.1} parent=1 // pred_check_branch
      %1586 = sbr.rel (0) target = $region77
    $region76: #{tpu_custom_call.1} parent=1 // pred_region
      %1588 = dma.done [#allocation4], 2048
    $region77: #{tpu_custom_call.1} parent=1 // pred_fallthru
      _
    %1589 = vsyncpa [#allocation3], 1
    %1590 = vsyncpa [#allocation6], 1
    %1591 = vsyncpa [#allocation9], 1
    %1592 = vsyncpa [#allocation4], 1

</llo_original>
